<compile_context>
chip_gen: v6e
topology: v6e:2x2x1
jax: 0.10.0
libtpu: 0.0.40
codegen_flags: <defaults>
</compile_context>

<pallas_src>
import functools

import numpy as np
import jax
import jax.numpy as jnp
from jax import lax
from jax.experimental import pallas as pl
from jax.experimental.pallas import tpu as pltpu


_PARAM_ORDER = ("wq", "wk", "wv", "bq", "bk", "bv", "wo", "w1", "b1", "w2", "vecs")


def _layer_norm(x, g, b, eps=1e-5):
    # PyTorch nn.LayerNorm semantics (biased variance, eps inside sqrt).
    mean = jnp.mean(x, axis=-1, keepdims=True)
    var = jnp.mean((x - mean) ** 2, axis=-1, keepdims=True)
    return (x - mean) * lax.rsqrt(var + eps) * g + b


# ----------------------------- Pallas kernel ---------------------------------

def encoder_kernel(counts_ref, x_ref, *rest, n_head, d_k, d_v, bt, has_adj):
    """One (batch block, layer) step of the fused transformer encoder.

    counts_ref: (B_pad,) int32 in SMEM (scalar prefetch)
    x_ref:      (Bt, L, D) input features (consumed at layer 0 only)
    adj_ref:    (Bt, L, L) int8, nonzero = blocked by adjacency (optional)
    weight slabs: blocked per-layer along the layer grid axis (bf16 matmul ops)
    out_ref:    (Bt, L, D) written at the last layer only
    bias_scr / npm_scr / act_scr: persistent VMEM scratch (masks + activation)
    """
    if has_adj:
        adj_ref, rest = rest[0], rest[1:]
    else:
        adj_ref = None
    (wq_ref, wk_ref, wv_ref, bq_ref, bk_ref, bv_ref, wo_ref,
     w1_ref, b1_ref, w2_ref, vec_ref,
     out_ref, bias_scr, npm_scr, act_scr) = rest

    bb = pl.program_id(0)
    layer = pl.program_id(1)
    n_layers = pl.num_programs(1)
    _, L, D = x_ref.shape
    H, dk, dv = n_head, d_k, d_v
    M = bt * L

    # ---- per-batch-block setup (layer 0 only): seed activation + build masks ----
    @pl.when(layer == 0)
    def _():
        act_scr[...] = x_ref[...].reshape(M, D)
        key_idx = lax.broadcasted_iota(jnp.int32, (L, L), 1)
        row_idx = lax.broadcasted_iota(jnp.int32, (L, 1), 0)
        for i in range(bt):                      # Bt is small & static
            cnt = counts_ref[bb * bt + i]
            blocked = key_idx >= cnt             # padded keys
            if has_adj:
                blocked = jnp.logical_or(blocked, adj_ref[i].astype(jnp.int32) > 0)
            bias_scr[i] = jnp.where(blocked, jnp.float32(-1e30), jnp.float32(0.0))
            npm_scr[pl.ds(i * L, L), :] = (row_idx < cnt).astype(jnp.float32)

    x = act_scr[...]                             # (M, D) f32 running activation
    xb = x.astype(jnp.bfloat16)
    bias = bias_scr[...]                         # (Bt, L, L) additive mask
    npm = npm_scr[...]                           # (M, 1) non-pad mask

    inv_temp = jnp.float32(1.0 / np.sqrt(d_k))

    # ---- multi-head self-attention (heads statically unrolled) ----
    attn_out = jnp.zeros((M, D), jnp.float32)
    for h in range(H):
        q = jnp.dot(xb, wq_ref[0, h], preferred_element_type=jnp.float32) + bq_ref[0, h]
        k = jnp.dot(xb, wk_ref[0, h], preferred_element_type=jnp.float32) + bk_ref[0, h]
        v = jnp.dot(xb, wv_ref[0, h], preferred_element_type=jnp.float32) + bv_ref[0, h]
        q3 = (q * inv_temp).reshape(bt, L, dk).astype(jnp.bfloat16)
        k3 = k.reshape(bt, L, dk).astype(jnp.bfloat16)
        v3 = v.reshape(bt, L, dv).astype(jnp.bfloat16)

        s = jnp.einsum('bqd,bkd->bqk', q3, k3,
                       preferred_element_type=jnp.float32) + bias
        s_max = jnp.max(s, axis=-1, keepdims=True)
        e = jnp.exp(s - s_max)
        attn = e / jnp.sum(e, axis=-1, keepdims=True)        # exact divide

        ctx = jnp.einsum('bqk,bkd->bqd', attn.astype(jnp.bfloat16), v3,
                         preferred_element_type=jnp.float32)  # (Bt, L, dv)
        attn_out = attn_out + jnp.dot(
            ctx.reshape(M, dv).astype(jnp.bfloat16), wo_ref[0, h],
            preferred_element_type=jnp.float32)

    # ---- residual + LayerNorm + position-wise FFN ----
    vec = vec_ref[0]                                          # (6, D) f32
    bo, g1, be1 = vec[0:1], vec[1:2], vec[2:3]
    b2, g2, be2 = vec[3:4], vec[4:5], vec[5:6]

    x1 = _layer_norm(attn_out + bo + x, g1, be1) * npm

    h1 = jnp.maximum(
        jnp.dot(x1.astype(jnp.bfloat16), w1_ref[0],
                preferred_element_type=jnp.float32) + b1_ref[0], 0.0)
    h2 = jnp.dot(h1.astype(jnp.bfloat16), w2_ref[0],
                 preferred_element_type=jnp.float32) + b2
    x_new = _layer_norm(h2 + x1, g2, be2) * npm

    act_scr[...] = x_new                                      # stays VMEM-resident

    @pl.when(layer == n_layers - 1)
    def _():
        out_ref[...] = x_new.reshape(bt, L, D)


def run_encoder(x_pad, counts, params, *, n_head, d_k, d_v, n_layer,
                batch_block, adj_blocked=None):
    B, L, D = x_pad.shape
    Bt = batch_block
    has_adj = adj_blocked is not None

    # pad batch to a multiple of the batch block (padded rows have count 0)
    B_pad = ((B + Bt - 1) // Bt) * Bt
    if B_pad != B:
        x_pad = jnp.pad(x_pad, ((0, B_pad - B), (0, 0), (0, 0)))
        counts = jnp.pad(counts, (0, B_pad - B))
        if has_adj:
            adj_blocked = jnp.pad(adj_blocked, ((0, B_pad - B), (0, 0), (0, 0)))

    def wspec(arr):
        nd = arr.ndim
        return pl.BlockSpec((1,) + arr.shape[1:],
                            lambda bb, l, c, _n=nd: (l,) + (0,) * (_n - 1))

    in_specs = [pl.BlockSpec((Bt, L, D), lambda bb, l, c: (bb, 0, 0))]
    inputs = [x_pad]
    if has_adj:
        in_specs.append(pl.BlockSpec((Bt, L, L), lambda bb, l, c: (bb, 0, 0)))
        inputs.append(adj_blocked)
    for name in _PARAM_ORDER:
        in_specs.append(wspec(params[name]))
        inputs.append(params[name])

    kernel = functools.partial(encoder_kernel, n_head=n_head, d_k=d_k,
                               d_v=d_v, bt=Bt, has_adj=has_adj)

    grid_spec = pltpu.PrefetchScalarGridSpec(
        num_scalar_prefetch=1,
        grid=(B_pad // Bt, n_layer),
        in_specs=in_specs,
        out_specs=pl.BlockSpec((Bt, L, D), lambda bb, l, c: (bb, 0, 0)),
        scratch_shapes=[
            pltpu.VMEM((Bt, L, L), jnp.float32),    # additive attention bias
            pltpu.VMEM((Bt * L, 1), jnp.float32),   # non-pad mask
            pltpu.VMEM((Bt * L, D), jnp.float32),   # resident activation
        ],
    )

    out = pl.pallas_call(
        kernel,
        grid_spec=grid_spec,
        out_shape=jax.ShapeDtypeStruct((B_pad, L, D), jnp.float32),
        compiler_params=pltpu.CompilerParams(
            dimension_semantics=("parallel", "arbitrary"),
            vmem_limit_bytes=48 * 1024 * 1024),
    )(counts, *inputs)
    return out[:B]


# --------------------------- Module-level wrapper -----------------------------

class BaseTransformerEncoderPallas:
    """JAX/Pallas re-implementation of BaseTransformerEncoder.forward (eval mode).

    input_dim -> d_model, out_dim -> d_inner (FFN hidden); output dim == input_dim.
    """

    def __init__(self, input_dim, out_dim, n_layer, num_head, k_dim, v_dim,
                 dropout_rate=0.1, key=None, batch_block=None):
        self.input_dim = input_dim
        self.out_dim = out_dim
        self.n_layer = n_layer
        self.num_head = num_head
        self.k_dim = k_dim
        self.v_dim = v_dim
        self.dropout_rate = dropout_rate  # identity at inference
        self.batch_block = batch_block

        if key is None:
            key = jax.random.PRNGKey(0)
        D, H, dk, dv, dh = input_dim, num_head, k_dim, v_dim, out_dim

        per_layer = {name: [] for name in _PARAM_ORDER}
        for _ in range(n_layer):
            key, *ks = jax.random.split(key, 7)
            per_layer["wq"].append(jax.random.normal(ks[0], (H, D, dk)) * np.sqrt(2.0 / (D + dk)))
            per_layer["wk"].append(jax.random.normal(ks[1], (H, D, dk)) * np.sqrt(2.0 / (D + dk)))
            per_layer["wv"].append(jax.random.normal(ks[2], (H, D, dv)) * np.sqrt(2.0 / (D + dv)))
            per_layer["wo"].append(jax.random.normal(ks[3], (H, dv, D)) * np.sqrt(2.0 / (H * dv + D)))
            per_layer["w1"].append(jax.random.normal(ks[4], (D, dh)) * np.sqrt(2.0 / (D + dh)))
            per_layer["w2"].append(jax.random.normal(ks[5], (dh, D)) * np.sqrt(2.0 / (dh + D)))
            per_layer["bq"].append(jnp.zeros((H, 1, dk)))
            per_layer["bk"].append(jnp.zeros((H, 1, dk)))
            per_layer["bv"].append(jnp.zeros((H, 1, dv)))
            per_layer["b1"].append(jnp.zeros((1, dh)))
            per_layer["vecs"].append(jnp.stack([
                jnp.zeros((D,)),   # output-projection bias
                jnp.ones((D,)),    # LayerNorm-1 gamma
                jnp.zeros((D,)),   # LayerNorm-1 beta
                jnp.zeros((D,)),   # FFN second-conv bias
                jnp.ones((D,)),    # LayerNorm-2 gamma
                jnp.zeros((D,)),   # LayerNorm-2 beta
            ], axis=0))

        matmul_weights = {"wq", "wk", "wv", "wo", "w1", "w2"}
        self.params = {}
        for name, vals in per_layer.items():
            arr = jnp.stack(vals)
            self.params[name] = arr.astype(
                jnp.bfloat16 if name in matmul_weights else jnp.float32)

    @staticmethod
    def build_padding_adj(adj_matrices, counts, pad_size=None):
        """Pad each adj matrix to (pad, pad): diag=1, -1 elsewhere, adj top-left."""
        pad = int(pad_size if pad_size is not None else max(counts))
        res = []
        for adj in adj_matrices:
            adj = jnp.asarray(adj, jnp.float32)
            n = adj.shape[0]
            mat = jnp.full((pad, pad), -1.0, jnp.float32)
            mat = mat.at[jnp.arange(pad), jnp.arange(pad)].set(1.0)
            mat = mat.at[:n, :n].set(adj)
            res.append(mat)
        return jnp.stack(res)

    def forward(self, features, counts, adj_matrices=None):
        counts = [int(c) for c in counts]
        B = len(counts)
        L = int(max(counts))
        L_pad = ((L + 7) // 8) * 8            # sublane-friendly sequence padding
        D = self.input_dim

        # split + pad_sequence(batch_first=True)
        segs, off = [], 0
        for c in counts:
            seg = features[off:off + c]
            segs.append(jnp.pad(seg, ((0, L_pad - c), (0, 0))))
            off += c
        x_pad = jnp.stack(segs).astype(jnp.float32)              # (B, L_pad, D)

        adj_blocked = None
        if adj_matrices is not None:
            adj = self.build_padding_adj(adj_matrices, counts, pad_size=L_pad)
            # TODO(synk): exact adjacency/attention-mask combination inside the
            # original TransformerEncoder is not shown; assume negative entries
            # (not connected) are additionally blocked for attention.
            adj_blocked = (adj < 0).astype(jnp.int8)              # 1 == blocked

        Bt = self.batch_block
        if Bt is None:
            # keep >= 2 grid steps on the parallel axis (v7x has 2 TCs), cap at 8
            Bt = max(1, min(8, B // 2)) if B > 1 else 1

        counts_arr = jnp.asarray(counts, jnp.int32)
        x_out = run_encoder(x_pad, counts_arr, self.params,
                            n_head=self.num_head, d_k=self.k_dim,
                            d_v=self.v_dim, n_layer=self.n_layer,
                            batch_block=Bt, adj_blocked=adj_blocked)

        # enc_output[non_pad_mask] -> gather valid rows back to (N_total, D)
        flat = x_out.reshape(B * L_pad, D)
        gather_idx = np.concatenate(
            [np.arange(c) + b * L_pad for b, c in enumerate(counts)]).astype(np.int32)
        return jnp.take(flat, jnp.asarray(gather_idx), axis=0)


# ----------------------------------- main -------------------------------------

if __name__ == "__main__":
    key = jax.random.PRNGKey(0)
    input_dim, out_dim = 32, 64
    n_layer, num_head, k_dim, v_dim = 2, 2, 8, 8
    counts = [8, 5]
    n_total = sum(counts)

    kf, kp, ka = jax.random.split(key, 3)
    features = jax.random.normal(kf, (n_total, input_dim), jnp.float32)

    enc = BaseTransformerEncoderPallas(input_dim, out_dim, n_layer,
                                       num_head, k_dim, v_dim, key=kp)

    # dense-connect path
    out = enc.forward(features, counts, adj_matrices=None)
    out = jax.block_until_ready(out)
    assert out.shape == (n_total, input_dim), out.shape
    assert bool(jnp.all(jnp.isfinite(out)))

    # adjacency-mask path (negative == not connected, diag connected)
    adjs = []
    for c in counts:
        ka, sub = jax.random.split(ka)
        a = (jax.random.uniform(sub, (c, c)) > 0.5).astype(jnp.float32) * 2.0 - 1.0
        a = a.at[jnp.arange(c), jnp.arange(c)].set(1.0)
        adjs.append(a)
    out_adj = enc.forward(features, counts, adj_matrices=adjs)
    out_adj = jax.block_until_ready(out_adj)
    assert out_adj.shape == (n_total, input_dim), out_adj.shape
    assert bool(jnp.all(jnp.isfinite(out_adj)))

    print("KERNEL_OK")
</pallas_src>

<mosaic_0001>
module attributes {stable_mosaic.version = 11 : i64} {
  func.func @encoder_kernel(%arg0: i32, %arg1: i32, %arg2: memref<2xi32, #tpu.memory_space<smem>>, %arg3: memref<1x8x32xf32, #tpu.memory_space<vmem>>, %arg4: memref<1x2x32x8xbf16, #tpu.memory_space<vmem>>, %arg5: memref<1x2x32x8xbf16, #tpu.memory_space<vmem>>, %arg6: memref<1x2x32x8xbf16, #tpu.memory_space<vmem>>, %arg7: memref<1x2x1x8xf32, #tpu.memory_space<vmem>>, %arg8: memref<1x2x1x8xf32, #tpu.memory_space<vmem>>, %arg9: memref<1x2x1x8xf32, #tpu.memory_space<vmem>>, %arg10: memref<1x2x8x32xbf16, #tpu.memory_space<vmem>>, %arg11: memref<1x32x64xbf16, #tpu.memory_space<vmem>>, %arg12: memref<1x1x64xf32, #tpu.memory_space<vmem>>, %arg13: memref<1x64x32xbf16, #tpu.memory_space<vmem>>, %arg14: memref<1x6x32xf32, #tpu.memory_space<vmem>>, %arg15: memref<1x8x32xf32, #tpu.memory_space<vmem>>, %arg16: memref<1x8x8xf32, #tpu.memory_space<vmem>>, %arg17: memref<8x1xf32, #tpu.memory_space<vmem>>, %arg18: memref<8x32xf32, #tpu.memory_space<vmem>>) attributes {dimension_semantics = [#tpu.dimension_semantics<parallel>, #tpu.dimension_semantics<arbitrary>], iteration_bounds = array<i64: 2, 2>, scalar_prefetch = 1 : i64, scratch_operands = 3 : i64, tpu.core_type = #tpu.core_type<tc>, window_params = [{transform_indices = @transform_0, window_bounds = array<i64: 1, 8, 32>}, {transform_indices = @transform_1, window_bounds = array<i64: 1, 2, 32, 8>}, {transform_indices = @transform_2, window_bounds = array<i64: 1, 2, 32, 8>}, {transform_indices = @transform_3, window_bounds = array<i64: 1, 2, 32, 8>}, {transform_indices = @transform_4, window_bounds = array<i64: 1, 2, 1, 8>}, {transform_indices = @transform_5, window_bounds = array<i64: 1, 2, 1, 8>}, {transform_indices = @transform_6, window_bounds = array<i64: 1, 2, 1, 8>}, {transform_indices = @transform_7, window_bounds = array<i64: 1, 2, 8, 32>}, {transform_indices = @transform_8, window_bounds = array<i64: 1, 32, 64>}, {transform_indices = @transform_9, window_bounds = array<i64: 1, 1, 64>}, {transform_indices = @transform_10, window_bounds = array<i64: 1, 64, 32>}, {transform_indices = @transform_11, window_bounds = array<i64: 1, 6, 32>}, {transform_indices = @transform_12, window_bounds = array<i64: 1, 8, 32>}]} {
    %c0_i32 = arith.constant 0 : i32
    %0 = arith.cmpi eq, %arg1, %c0_i32 : i32
    %1 = arith.extui %0 : i1 to i32
    %c0_i32_0 = arith.constant 0 : i32
    %2 = arith.cmpi ne, %1, %c0_i32_0 : i32
    scf.if %2 {
      %c0_108 = arith.constant 0 : index
      %c0_109 = arith.constant 0 : index
      %c0_110 = arith.constant 0 : index
      %184 = vector.load %arg3[%c0_108, %c0_109, %c0_110] : memref<1x8x32xf32, #tpu.memory_space<vmem>>, vector<1x8x32xf32>
      %185 = vector.shape_cast %184 : vector<1x8x32xf32> to vector<8x32xf32>
      %c0_111 = arith.constant 0 : index
      %c0_112 = arith.constant 0 : index
      %186 = vector.load %arg18[%c0_111, %c0_112] : memref<8x32xf32, #tpu.memory_space<vmem>>, vector<8x32xf32>
      tpu.vector_store %arg18[%c0_111, %c0_112], %185 {strides = array<i32>} : memref<8x32xf32, #tpu.memory_space<vmem>>, vector<8x32xf32>,
      %187 = tpu.iota {dimensions = array<i32: 1>} : vector<8x8xi32>
      %188 = tpu.iota {dimensions = array<i32: 0>} : vector<8x1xi32>
      %c1_i32_113 = arith.constant 1 : i32
      %189 = arith.muli %arg0, %c1_i32_113 : i32
      %c0_i32_114 = arith.constant 0 : i32
      %190 = arith.addi %189, %c0_i32_114 : i32
      %191 = arith.index_cast %190 : i32 to index
      %192 = memref.load %arg2[%191] : memref<2xi32, #tpu.memory_space<smem>>
      %193 = vector.broadcast %192 : i32 to vector<8x8xi32>
      %194 = arith.cmpi sge, %187, %193 : vector<8x8xi32>
      %cst_115 = arith.constant -1.000000e+30 : f32
      %cst_116 = arith.constant 0.000000e+00 : f32
      %195 = vector.broadcast %cst_115 : f32 to vector<8x8xf32>
      %196 = vector.broadcast %cst_116 : f32 to vector<8x8xf32>
      %197 = arith.select %194, %195, %196 : vector<8x8xi1>, vector<8x8xf32>
      %c0_117 = arith.constant 0 : index
      %c0_118 = arith.constant 0 : index
      %c0_119 = arith.constant 0 : index
      %198 = vector.load %arg16[%c0_117, %c0_118, %c0_119] : memref<1x8x8xf32, #tpu.memory_space<vmem>>, vector<1x8x8xf32>
      %199 = vector.shape_cast %198 : vector<1x8x8xf32> to vector<8x8xf32>
      %200 = vector.shape_cast %197 : vector<8x8xf32> to vector<1x8x8xf32>
      tpu.vector_store %arg16[%c0_117, %c0_118, %c0_119], %200 {strides = array<i32>} : memref<1x8x8xf32, #tpu.memory_space<vmem>>, vector<1x8x8xf32>,
      %201 = vector.broadcast %192 : i32 to vector<8x1xi32>
      %202 = arith.cmpi slt, %188, %201 : vector<8x1xi32>
      %203 = arith.extui %202 : vector<8x1xi1> to vector<8x1xi32>
      %204 = arith.sitofp %203 : vector<8x1xi32> to vector<8x1xf32>
      %c0_120 = arith.constant 0 : index
      %c0_121 = arith.constant 0 : index
      %205 = vector.load %arg17[%c0_120, %c0_121] : memref<8x1xf32, #tpu.memory_space<vmem>>, vector<8x1xf32>
      tpu.vector_store %arg17[%c0_120, %c0_121], %204 {strides = array<i32>} : memref<8x1xf32, #tpu.memory_space<vmem>>, vector<8x1xf32>,
    } else {
    }
    %c0 = arith.constant 0 : index
    %c0_1 = arith.constant 0 : index
    %3 = vector.load %arg18[%c0, %c0_1] : memref<8x32xf32, #tpu.memory_space<vmem>>, vector<8x32xf32>
    %4 = arith.truncf %3 : vector<8x32xf32> to vector<8x32xbf16>
    %c0_2 = arith.constant 0 : index
    %c0_3 = arith.constant 0 : index
    %c0_4 = arith.constant 0 : index
    %5 = vector.load %arg16[%c0_2, %c0_3, %c0_4] : memref<1x8x8xf32, #tpu.memory_space<vmem>>, vector<1x8x8xf32>
    %c0_5 = arith.constant 0 : index
    %c0_6 = arith.constant 0 : index
    %6 = vector.load %arg17[%c0_5, %c0_6] : memref<8x1xf32, #tpu.memory_space<vmem>>, vector<8x1xf32>
    %cst = arith.constant 0.000000e+00 : f32
    %7 = vector.broadcast %cst : f32 to vector<8x32xf32>
    %c0_7 = arith.constant 0 : index
    %c0_8 = arith.constant 0 : index
    %c0_9 = arith.constant 0 : index
    %c0_10 = arith.constant 0 : index
    %8 = vector.load %arg4[%c0_7, %c0_8, %c0_9, %c0_10] : memref<1x2x32x8xbf16, #tpu.memory_space<vmem>>, vector<1x1x32x8xbf16>
    %9 = vector.shape_cast %8 : vector<1x1x32x8xbf16> to vector<32x8xbf16>
    %cst_11 = arith.constant dense<0.000000e+00> : vector<8x8xf32>
    %10 = tpu.matmul %4, %9, %cst_11 {dimension_numbers = #tpu.dot_dimension_numbers<[1], [0], [0], [1], [0, 0, 1, 1], [], []>} : vector<8x32xbf16>, vector<32x8xbf16>, vector<8x8xf32> -> vector<8x8xf32>
    %c0_12 = arith.constant 0 : index
    %c0_13 = arith.constant 0 : index
    %c0_14 = arith.constant 0 : index
    %c0_15 = arith.constant 0 : index
    %11 = vector.load %arg7[%c0_12, %c0_13, %c0_14, %c0_15] : memref<1x2x1x8xf32, #tpu.memory_space<vmem>>, vector<1x1x1x8xf32>
    %12 = vector.shape_cast %11 : vector<1x1x1x8xf32> to vector<1x8xf32>
    %13 = vector.broadcast %12 : vector<1x8xf32> to vector<8x8xf32>
    %14 = arith.addf %10, %13 : vector<8x8xf32>
    %c0_16 = arith.constant 0 : index
    %c0_17 = arith.constant 0 : index
    %c0_18 = arith.constant 0 : index
    %c0_19 = arith.constant 0 : index
    %15 = vector.load %arg5[%c0_16, %c0_17, %c0_18, %c0_19] : memref<1x2x32x8xbf16, #tpu.memory_space<vmem>>, vector<1x1x32x8xbf16>
    %16 = vector.shape_cast %15 : vector<1x1x32x8xbf16> to vector<32x8xbf16>
    %cst_20 = arith.constant dense<0.000000e+00> : vector<8x8xf32>
    %17 = tpu.matmul %4, %16, %cst_20 {dimension_numbers = #tpu.dot_dimension_numbers<[1], [0], [0], [1], [0, 0, 1, 1], [], []>} : vector<8x32xbf16>, vector<32x8xbf16>, vector<8x8xf32> -> vector<8x8xf32>
    %c0_21 = arith.constant 0 : index
    %c0_22 = arith.constant 0 : index
    %c0_23 = arith.constant 0 : index
    %c0_24 = arith.constant 0 : index
    %18 = vector.load %arg8[%c0_21, %c0_22, %c0_23, %c0_24] : memref<1x2x1x8xf32, #tpu.memory_space<vmem>>, vector<1x1x1x8xf32>
    %19 = vector.shape_cast %18 : vector<1x1x1x8xf32> to vector<1x8xf32>
    %20 = vector.broadcast %19 : vector<1x8xf32> to vector<8x8xf32>
    %21 = arith.addf %17, %20 : vector<8x8xf32>
    %c0_25 = arith.constant 0 : index
    %c0_26 = arith.constant 0 : index
    %c0_27 = arith.constant 0 : index
    %c0_28 = arith.constant 0 : index
    %22 = vector.load %arg6[%c0_25, %c0_26, %c0_27, %c0_28] : memref<1x2x32x8xbf16, #tpu.memory_space<vmem>>, vector<1x1x32x8xbf16>
    %23 = vector.shape_cast %22 : vector<1x1x32x8xbf16> to vector<32x8xbf16>
    %cst_29 = arith.constant dense<0.000000e+00> : vector<8x8xf32>
    %24 = tpu.matmul %4, %23, %cst_29 {dimension_numbers = #tpu.dot_dimension_numbers<[1], [0], [0], [1], [0, 0, 1, 1], [], []>} : vector<8x32xbf16>, vector<32x8xbf16>, vector<8x8xf32> -> vector<8x8xf32>
    %c0_30 = arith.constant 0 : index
    %c0_31 = arith.constant 0 : index
    %c0_32 = arith.constant 0 : index
    %c0_33 = arith.constant 0 : index
    %25 = vector.load %arg9[%c0_30, %c0_31, %c0_32, %c0_33] : memref<1x2x1x8xf32, #tpu.memory_space<vmem>>, vector<1x1x1x8xf32>
    %26 = vector.shape_cast %25 : vector<1x1x1x8xf32> to vector<1x8xf32>
    %27 = vector.broadcast %26 : vector<1x8xf32> to vector<8x8xf32>
    %28 = arith.addf %24, %27 : vector<8x8xf32>
    %cst_34 = arith.constant 0.353553385 : f32
    %29 = vector.broadcast %cst_34 : f32 to vector<8x8xf32>
    %30 = arith.mulf %14, %29 : vector<8x8xf32>
    %31 = vector.shape_cast %30 : vector<8x8xf32> to vector<1x8x8xf32>
    %32 = arith.truncf %31 : vector<1x8x8xf32> to vector<1x8x8xbf16>
    %33 = vector.shape_cast %21 : vector<8x8xf32> to vector<1x8x8xf32>
    %34 = arith.truncf %33 : vector<1x8x8xf32> to vector<1x8x8xbf16>
    %35 = vector.shape_cast %28 : vector<8x8xf32> to vector<1x8x8xf32>
    %36 = arith.truncf %35 : vector<1x8x8xf32> to vector<1x8x8xbf16>
    "tpu.trace_start"() <{level = 10 : i32, message = "bqd,bkd->bqk"}> : () -> ()
    %cst_35 = arith.constant dense<0.000000e+00> : vector<1x8x8xf32>
    %37 = tpu.matmul %32, %34, %cst_35 {dimension_numbers = #tpu.dot_dimension_numbers<[2], [2], [1], [1], [0, 0, 0, 1, 1, 1], [0], [0]>} : vector<1x8x8xbf16>, vector<1x8x8xbf16>, vector<1x8x8xf32> -> vector<1x8x8xf32>
    "tpu.trace_stop"() : () -> ()
    %38 = arith.addf %37, %5 : vector<1x8x8xf32>
    %cst_36 = arith.constant dense<0xFF800000> : vector<1x8xf32>
    %39 = vector.multi_reduction <maximumf>, %38, %cst_36 [2] : vector<1x8x8xf32> to vector<1x8xf32>
    %40 = vector.shape_cast %39 : vector<1x8xf32> to vector<1x8x1xf32>
    %41 = vector.broadcast %40 : vector<1x8x1xf32> to vector<1x8x8xf32>
    %42 = arith.subf %38, %41 : vector<1x8x8xf32>
    %43 = math.exp %42 : vector<1x8x8xf32>
    %cst_37 = arith.constant dense<0.000000e+00> : vector<1x8xf32>
    %44 = vector.multi_reduction <add>, %43, %cst_37 [2] : vector<1x8x8xf32> to vector<1x8xf32>
    %45 = vector.shape_cast %44 : vector<1x8xf32> to vector<1x8x1xf32>
    %46 = vector.broadcast %45 : vector<1x8x1xf32> to vector<1x8x8xf32>
    %47 = arith.divf %43, %46 : vector<1x8x8xf32>
    %48 = arith.truncf %47 : vector<1x8x8xf32> to vector<1x8x8xbf16>
    "tpu.trace_start"() <{level = 10 : i32, message = "bqk,bkd->bqd"}> : () -> ()
    %cst_38 = arith.constant dense<0.000000e+00> : vector<1x8x8xf32>
    %49 = tpu.matmul %48, %36, %cst_38 {dimension_numbers = #tpu.dot_dimension_numbers<[2], [1], [1], [2], [0, 0, 0, 1, 1, 2], [0], [0]>} : vector<1x8x8xbf16>, vector<1x8x8xbf16>, vector<1x8x8xf32> -> vector<1x8x8xf32>
    "tpu.trace_stop"() : () -> ()
    %50 = vector.shape_cast %49 : vector<1x8x8xf32> to vector<8x8xf32>
    %51 = arith.truncf %50 : vector<8x8xf32> to vector<8x8xbf16>
    %c0_39 = arith.constant 0 : index
    %c0_40 = arith.constant 0 : index
    %c0_41 = arith.constant 0 : index
    %c0_42 = arith.constant 0 : index
    %52 = vector.load %arg10[%c0_39, %c0_40, %c0_41, %c0_42] : memref<1x2x8x32xbf16, #tpu.memory_space<vmem>>, vector<1x1x8x32xbf16>
    %53 = vector.shape_cast %52 : vector<1x1x8x32xbf16> to vector<8x32xbf16>
    %cst_43 = arith.constant dense<0.000000e+00> : vector<8x32xf32>
    %54 = tpu.matmul %51, %53, %cst_43 {dimension_numbers = #tpu.dot_dimension_numbers<[1], [0], [0], [1], [0, 0, 1, 1], [], []>} : vector<8x8xbf16>, vector<8x32xbf16>, vector<8x32xf32> -> vector<8x32xf32>
    %55 = arith.addf %7, %54 : vector<8x32xf32>
    %c0_44 = arith.constant 0 : index
    %c1 = arith.constant 1 : index
    %c0_45 = arith.constant 0 : index
    %c0_46 = arith.constant 0 : index
    %56 = vector.load %arg4[%c0_44, %c1, %c0_45, %c0_46] : memref<1x2x32x8xbf16, #tpu.memory_space<vmem>>, vector<1x1x32x8xbf16>
    %57 = vector.shape_cast %56 : vector<1x1x32x8xbf16> to vector<32x8xbf16>
    %cst_47 = arith.constant dense<0.000000e+00> : vector<8x8xf32>
    %58 = tpu.matmul %4, %57, %cst_47 {dimension_numbers = #tpu.dot_dimension_numbers<[1], [0], [0], [1], [0, 0, 1, 1], [], []>} : vector<8x32xbf16>, vector<32x8xbf16>, vector<8x8xf32> -> vector<8x8xf32>
    %c0_48 = arith.constant 0 : index
    %c1_49 = arith.constant 1 : index
    %c0_50 = arith.constant 0 : index
    %c0_51 = arith.constant 0 : index
    %59 = vector.load %arg7[%c0_48, %c1_49, %c0_50, %c0_51] : memref<1x2x1x8xf32, #tpu.memory_space<vmem>>, vector<1x1x1x8xf32>
    %60 = vector.shape_cast %59 : vector<1x1x1x8xf32> to vector<1x8xf32>
    %61 = vector.broadcast %60 : vector<1x8xf32> to vector<8x8xf32>
    %62 = arith.addf %58, %61 : vector<8x8xf32>
    %c0_52 = arith.constant 0 : index
    %c1_53 = arith.constant 1 : index
    %c0_54 = arith.constant 0 : index
    %c0_55 = arith.constant 0 : index
    %63 = vector.load %arg5[%c0_52, %c1_53, %c0_54, %c0_55] : memref<1x2x32x8xbf16, #tpu.memory_space<vmem>>, vector<1x1x32x8xbf16>
    %64 = vector.shape_cast %63 : vector<1x1x32x8xbf16> to vector<32x8xbf16>
    %cst_56 = arith.constant dense<0.000000e+00> : vector<8x8xf32>
    %65 = tpu.matmul %4, %64, %cst_56 {dimension_numbers = #tpu.dot_dimension_numbers<[1], [0], [0], [1], [0, 0, 1, 1], [], []>} : vector<8x32xbf16>, vector<32x8xbf16>, vector<8x8xf32> -> vector<8x8xf32>
    %c0_57 = arith.constant 0 : index
    %c1_58 = arith.constant 1 : index
    %c0_59 = arith.constant 0 : index
    %c0_60 = arith.constant 0 : index
    %66 = vector.load %arg8[%c0_57, %c1_58, %c0_59, %c0_60] : memref<1x2x1x8xf32, #tpu.memory_space<vmem>>, vector<1x1x1x8xf32>
    %67 = vector.shape_cast %66 : vector<1x1x1x8xf32> to vector<1x8xf32>
    %68 = vector.broadcast %67 : vector<1x8xf32> to vector<8x8xf32>
    %69 = arith.addf %65, %68 : vector<8x8xf32>
    %c0_61 = arith.constant 0 : index
    %c1_62 = arith.constant 1 : index
    %c0_63 = arith.constant 0 : index
    %c0_64 = arith.constant 0 : index
    %70 = vector.load %arg6[%c0_61, %c1_62, %c0_63, %c0_64] : memref<1x2x32x8xbf16, #tpu.memory_space<vmem>>, vector<1x1x32x8xbf16>
    %71 = vector.shape_cast %70 : vector<1x1x32x8xbf16> to vector<32x8xbf16>
    %cst_65 = arith.constant dense<0.000000e+00> : vector<8x8xf32>
    %72 = tpu.matmul %4, %71, %cst_65 {dimension_numbers = #tpu.dot_dimension_numbers<[1], [0], [0], [1], [0, 0, 1, 1], [], []>} : vector<8x32xbf16>, vector<32x8xbf16>, vector<8x8xf32> -> vector<8x8xf32>
    %c0_66 = arith.constant 0 : index
    %c1_67 = arith.constant 1 : index
    %c0_68 = arith.constant 0 : index
    %c0_69 = arith.constant 0 : index
    %73 = vector.load %arg9[%c0_66, %c1_67, %c0_68, %c0_69] : memref<1x2x1x8xf32, #tpu.memory_space<vmem>>, vector<1x1x1x8xf32>
    %74 = vector.shape_cast %73 : vector<1x1x1x8xf32> to vector<1x8xf32>
    %75 = vector.broadcast %74 : vector<1x8xf32> to vector<8x8xf32>
    %76 = arith.addf %72, %75 : vector<8x8xf32>
    %cst_70 = arith.constant 0.353553385 : f32
    %77 = vector.broadcast %cst_70 : f32 to vector<8x8xf32>
    %78 = arith.mulf %62, %77 : vector<8x8xf32>
    %79 = vector.shape_cast %78 : vector<8x8xf32> to vector<1x8x8xf32>
    %80 = arith.truncf %79 : vector<1x8x8xf32> to vector<1x8x8xbf16>
    %81 = vector.shape_cast %69 : vector<8x8xf32> to vector<1x8x8xf32>
    %82 = arith.truncf %81 : vector<1x8x8xf32> to vector<1x8x8xbf16>
    %83 = vector.shape_cast %76 : vector<8x8xf32> to vector<1x8x8xf32>
    %84 = arith.truncf %83 : vector<1x8x8xf32> to vector<1x8x8xbf16>
    "tpu.trace_start"() <{level = 10 : i32, message = "bqd,bkd->bqk"}> : () -> ()
    %cst_71 = arith.constant dense<0.000000e+00> : vector<1x8x8xf32>
    %85 = tpu.matmul %80, %82, %cst_71 {dimension_numbers = #tpu.dot_dimension_numbers<[2], [2], [1], [1], [0, 0, 0, 1, 1, 1], [0], [0]>} : vector<1x8x8xbf16>, vector<1x8x8xbf16>, vector<1x8x8xf32> -> vector<1x8x8xf32>
    "tpu.trace_stop"() : () -> ()
    %86 = arith.addf %85, %5 : vector<1x8x8xf32>
    %cst_72 = arith.constant dense<0xFF800000> : vector<1x8xf32>
    %87 = vector.multi_reduction <maximumf>, %86, %cst_72 [2] : vector<1x8x8xf32> to vector<1x8xf32>
    %88 = vector.shape_cast %87 : vector<1x8xf32> to vector<1x8x1xf32>
    %89 = vector.broadcast %88 : vector<1x8x1xf32> to vector<1x8x8xf32>
    %90 = arith.subf %86, %89 : vector<1x8x8xf32>
    %91 = math.exp %90 : vector<1x8x8xf32>
    %cst_73 = arith.constant dense<0.000000e+00> : vector<1x8xf32>
    %92 = vector.multi_reduction <add>, %91, %cst_73 [2] : vector<1x8x8xf32> to vector<1x8xf32>
    %93 = vector.shape_cast %92 : vector<1x8xf32> to vector<1x8x1xf32>
    %94 = vector.broadcast %93 : vector<1x8x1xf32> to vector<1x8x8xf32>
    %95 = arith.divf %91, %94 : vector<1x8x8xf32>
    %96 = arith.truncf %95 : vector<1x8x8xf32> to vector<1x8x8xbf16>
    "tpu.trace_start"() <{level = 10 : i32, message = "bqk,bkd->bqd"}> : () -> ()
    %cst_74 = arith.constant dense<0.000000e+00> : vector<1x8x8xf32>
    %97 = tpu.matmul %96, %84, %cst_74 {dimension_numbers = #tpu.dot_dimension_numbers<[2], [1], [1], [2], [0, 0, 0, 1, 1, 2], [0], [0]>} : vector<1x8x8xbf16>, vector<1x8x8xbf16>, vector<1x8x8xf32> -> vector<1x8x8xf32>
    "tpu.trace_stop"() : () -> ()
    %98 = vector.shape_cast %97 : vector<1x8x8xf32> to vector<8x8xf32>
    %99 = arith.truncf %98 : vector<8x8xf32> to vector<8x8xbf16>
    %c0_75 = arith.constant 0 : index
    %c1_76 = arith.constant 1 : index
    %c0_77 = arith.constant 0 : index
    %c0_78 = arith.constant 0 : index
    %100 = vector.load %arg10[%c0_75, %c1_76, %c0_77, %c0_78] : memref<1x2x8x32xbf16, #tpu.memory_space<vmem>>, vector<1x1x8x32xbf16>
    %101 = vector.shape_cast %100 : vector<1x1x8x32xbf16> to vector<8x32xbf16>
    %cst_79 = arith.constant dense<0.000000e+00> : vector<8x32xf32>
    %102 = tpu.matmul %99, %101, %cst_79 {dimension_numbers = #tpu.dot_dimension_numbers<[1], [0], [0], [1], [0, 0, 1, 1], [], []>} : vector<8x8xbf16>, vector<8x32xbf16>, vector<8x32xf32> -> vector<8x32xf32>
    %103 = arith.addf %55, %102 : vector<8x32xf32>
    %c0_80 = arith.constant 0 : index
    %c0_81 = arith.constant 0 : index
    %c0_82 = arith.constant 0 : index
    %104 = vector.load %arg14[%c0_80, %c0_81, %c0_82] : memref<1x6x32xf32, #tpu.memory_space<vmem>>, vector<1x6x32xf32>
    %105 = vector.shape_cast %104 : vector<1x6x32xf32> to vector<6x32xf32>
    %106 = vector.extract_strided_slice %105 {offsets = [0, 0], sizes = [1, 32], strides = [1, 1]} : vector<6x32xf32> to vector<1x32xf32>
    %107 = vector.extract_strided_slice %105 {offsets = [1, 0], sizes = [1, 32], strides = [1, 1]} : vector<6x32xf32> to vector<1x32xf32>
    %108 = vector.extract_strided_slice %105 {offsets = [2, 0], sizes = [1, 32], strides = [1, 1]} : vector<6x32xf32> to vector<1x32xf32>
    %109 = vector.extract_strided_slice %105 {offsets = [3, 0], sizes = [1, 32], strides = [1, 1]} : vector<6x32xf32> to vector<1x32xf32>
    %110 = vector.extract_strided_slice %105 {offsets = [4, 0], sizes = [1, 32], strides = [1, 1]} : vector<6x32xf32> to vector<1x32xf32>
    %111 = vector.extract_strided_slice %105 {offsets = [5, 0], sizes = [1, 32], strides = [1, 1]} : vector<6x32xf32> to vector<1x32xf32>
    %112 = vector.broadcast %106 : vector<1x32xf32> to vector<8x32xf32>
    %113 = arith.addf %103, %112 : vector<8x32xf32>
    %114 = arith.addf %113, %3 : vector<8x32xf32>
    %cst_83 = arith.constant dense<0.000000e+00> : vector<8xf32>
    %115 = vector.multi_reduction <add>, %114, %cst_83 [1] : vector<8x32xf32> to vector<8xf32>
    %116 = vector.shape_cast %115 : vector<8xf32> to vector<8x1xf32>
    %cst_84 = arith.constant 3.200000e+01 : f32
    %117 = vector.broadcast %cst_84 : f32 to vector<8x1xf32>
    %118 = arith.divf %116, %117 : vector<8x1xf32>
    %119 = vector.broadcast %118 : vector<8x1xf32> to vector<8x32xf32>
    %120 = arith.subf %114, %119 : vector<8x32xf32>
    %121 = arith.mulf %120, %120 : vector<8x32xf32>
    %cst_85 = arith.constant dense<0.000000e+00> : vector<8xf32>
    %122 = vector.multi_reduction <add>, %121, %cst_85 [1] : vector<8x32xf32> to vector<8xf32>
    %123 = vector.shape_cast %122 : vector<8xf32> to vector<8x1xf32>
    %cst_86 = arith.constant 3.200000e+01 : f32
    %124 = vector.broadcast %cst_86 : f32 to vector<8x1xf32>
    %125 = arith.divf %123, %124 : vector<8x1xf32>
    %126 = vector.broadcast %118 : vector<8x1xf32> to vector<8x32xf32>
    %127 = arith.subf %114, %126 : vector<8x32xf32>
    %cst_87 = arith.constant 9.99999974E-6 : f32
    %128 = vector.broadcast %cst_87 : f32 to vector<8x1xf32>
    %129 = arith.addf %125, %128 : vector<8x1xf32>
    %130 = math.rsqrt %129 : vector<8x1xf32>
    %131 = vector.broadcast %130 : vector<8x1xf32> to vector<8x32xf32>
    %132 = arith.mulf %127, %131 : vector<8x32xf32>
    %133 = vector.broadcast %107 : vector<1x32xf32> to vector<8x32xf32>
    %134 = arith.mulf %132, %133 : vector<8x32xf32>
    %135 = vector.broadcast %108 : vector<1x32xf32> to vector<8x32xf32>
    %136 = arith.addf %134, %135 : vector<8x32xf32>
    %137 = vector.broadcast %6 : vector<8x1xf32> to vector<8x32xf32>
    %138 = arith.mulf %136, %137 : vector<8x32xf32>
    %139 = arith.truncf %138 : vector<8x32xf32> to vector<8x32xbf16>
    %c0_88 = arith.constant 0 : index
    %c0_89 = arith.constant 0 : index
    %c0_90 = arith.constant 0 : index
    %140 = vector.load %arg11[%c0_88, %c0_89, %c0_90] : memref<1x32x64xbf16, #tpu.memory_space<vmem>>, vector<1x32x64xbf16>
    %141 = vector.shape_cast %140 : vector<1x32x64xbf16> to vector<32x64xbf16>
    %cst_91 = arith.constant dense<0.000000e+00> : vector<8x64xf32>
    %142 = tpu.matmul %139, %141, %cst_91 {dimension_numbers = #tpu.dot_dimension_numbers<[1], [0], [0], [1], [0, 0, 1, 1], [], []>} : vector<8x32xbf16>, vector<32x64xbf16>, vector<8x64xf32> -> vector<8x64xf32>
    %c0_92 = arith.constant 0 : index
    %c0_93 = arith.constant 0 : index
    %c0_94 = arith.constant 0 : index
    %143 = vector.load %arg12[%c0_92, %c0_93, %c0_94] : memref<1x1x64xf32, #tpu.memory_space<vmem>>, vector<1x1x64xf32>
    %144 = vector.shape_cast %143 : vector<1x1x64xf32> to vector<1x64xf32>
    %145 = vector.broadcast %144 : vector<1x64xf32> to vector<8x64xf32>
    %146 = arith.addf %142, %145 : vector<8x64xf32>
    %cst_95 = arith.constant 0.000000e+00 : f32
    %147 = vector.broadcast %cst_95 : f32 to vector<8x64xf32>
    %148 = arith.maximumf %146, %147 : vector<8x64xf32>
    %149 = arith.truncf %148 : vector<8x64xf32> to vector<8x64xbf16>
    %c0_96 = arith.constant 0 : index
    %c0_97 = arith.constant 0 : index
    %c0_98 = arith.constant 0 : index
    %150 = vector.load %arg13[%c0_96, %c0_97, %c0_98] : memref<1x64x32xbf16, #tpu.memory_space<vmem>>, vector<1x64x32xbf16>
    %151 = vector.shape_cast %150 : vector<1x64x32xbf16> to vector<64x32xbf16>
    %cst_99 = arith.constant dense<0.000000e+00> : vector<8x32xf32>
    %152 = tpu.matmul %149, %151, %cst_99 {dimension_numbers = #tpu.dot_dimension_numbers<[1], [0], [0], [1], [0, 0, 1, 1], [], []>} : vector<8x64xbf16>, vector<64x32xbf16>, vector<8x32xf32> -> vector<8x32xf32>
    %153 = vector.broadcast %109 : vector<1x32xf32> to vector<8x32xf32>
    %154 = arith.addf %152, %153 : vector<8x32xf32>
    %155 = arith.addf %154, %138 : vector<8x32xf32>
    %cst_100 = arith.constant dense<0.000000e+00> : vector<8xf32>
    %156 = vector.multi_reduction <add>, %155, %cst_100 [1] : vector<8x32xf32> to vector<8xf32>
    %157 = vector.shape_cast %156 : vector<8xf32> to vector<8x1xf32>
    %cst_101 = arith.constant 3.200000e+01 : f32
    %158 = vector.broadcast %cst_101 : f32 to vector<8x1xf32>
    %159 = arith.divf %157, %158 : vector<8x1xf32>
    %160 = vector.broadcast %159 : vector<8x1xf32> to vector<8x32xf32>
    %161 = arith.subf %155, %160 : vector<8x32xf32>
    %162 = arith.mulf %161, %161 : vector<8x32xf32>
    %cst_102 = arith.constant dense<0.000000e+00> : vector<8xf32>
    %163 = vector.multi_reduction <add>, %162, %cst_102 [1] : vector<8x32xf32> to vector<8xf32>
    %164 = vector.shape_cast %163 : vector<8xf32> to vector<8x1xf32>
    %cst_103 = arith.constant 3.200000e+01 : f32
    %165 = vector.broadcast %cst_103 : f32 to vector<8x1xf32>
    %166 = arith.divf %164, %165 : vector<8x1xf32>
    %167 = vector.broadcast %159 : vector<8x1xf32> to vector<8x32xf32>
    %168 = arith.subf %155, %167 : vector<8x32xf32>
    %cst_104 = arith.constant 9.99999974E-6 : f32
    %169 = vector.broadcast %cst_104 : f32 to vector<8x1xf32>
    %170 = arith.addf %166, %169 : vector<8x1xf32>
    %171 = math.rsqrt %170 : vector<8x1xf32>
    %172 = vector.broadcast %171 : vector<8x1xf32> to vector<8x32xf32>
    %173 = arith.mulf %168, %172 : vector<8x32xf32>
    %174 = vector.broadcast %110 : vector<1x32xf32> to vector<8x32xf32>
    %175 = arith.mulf %173, %174 : vector<8x32xf32>
    %176 = vector.broadcast %111 : vector<1x32xf32> to vector<8x32xf32>
    %177 = arith.addf %175, %176 : vector<8x32xf32>
    %178 = vector.broadcast %6 : vector<8x1xf32> to vector<8x32xf32>
    %179 = arith.mulf %177, %178 : vector<8x32xf32>
    %c0_105 = arith.constant 0 : index
    %c0_106 = arith.constant 0 : index
    %180 = vector.load %arg18[%c0_105, %c0_106] : memref<8x32xf32, #tpu.memory_space<vmem>>, vector<8x32xf32>
    tpu.vector_store %arg18[%c0_105, %c0_106], %179 {strides = array<i32>} : memref<8x32xf32, #tpu.memory_space<vmem>>, vector<8x32xf32>,
    %c1_i32 = arith.constant 1 : i32
    %181 = arith.cmpi eq, %arg1, %c1_i32 : i32
    %182 = arith.extui %181 : i1 to i32
    %c0_i32_107 = arith.constant 0 : i32
    %183 = arith.cmpi ne, %182, %c0_i32_107 : i32
    scf.if %183 {
      %184 = vector.shape_cast %179 : vector<8x32xf32> to vector<1x8x32xf32>
      %c0_108 = arith.constant 0 : index
      %c0_109 = arith.constant 0 : index
      %c0_110 = arith.constant 0 : index
      %185 = vector.load %arg15[%c0_108, %c0_109, %c0_110] : memref<1x8x32xf32, #tpu.memory_space<vmem>>, vector<1x8x32xf32>
      tpu.vector_store %arg15[%c0_108, %c0_109, %c0_110], %184 {strides = array<i32>} : memref<1x8x32xf32, #tpu.memory_space<vmem>>, vector<1x8x32xf32>,
    } else {
    }
    return
  }
  func.func @transform_0(%arg0: i32, %arg1: i32, %arg2: memref<2xi32, #tpu.memory_space<smem>>) -> (i32, i32, i32) {
    %c0_i32 = arith.constant 0 : i32
    %c0_i32_0 = arith.constant 0 : i32
    %c0_i32_1 = arith.constant 0 : i32
    return %arg0, %c0_i32, %c0_i32_0 : i32, i32, i32
  }
  func.func @transform_1(%arg0: i32, %arg1: i32, %arg2: memref<2xi32, #tpu.memory_space<smem>>) -> (i32, i32, i32, i32) {
    %c0_i32 = arith.constant 0 : i32
    %c0_i32_0 = arith.constant 0 : i32
    %c0_i32_1 = arith.constant 0 : i32
    %c0_i32_2 = arith.constant 0 : i32
    return %arg1, %c0_i32, %c0_i32_0, %c0_i32_1 : i32, i32, i32, i32
  }
  func.func @transform_2(%arg0: i32, %arg1: i32, %arg2: memref<2xi32, #tpu.memory_space<smem>>) -> (i32, i32, i32, i32) {
    %c0_i32 = arith.constant 0 : i32
    %c0_i32_0 = arith.constant 0 : i32
    %c0_i32_1 = arith.constant 0 : i32
    %c0_i32_2 = arith.constant 0 : i32
    return %arg1, %c0_i32, %c0_i32_0, %c0_i32_1 : i32, i32, i32, i32
  }
  func.func @transform_3(%arg0: i32, %arg1: i32, %arg2: memref<2xi32, #tpu.memory_space<smem>>) -> (i32, i32, i32, i32) {
    %c0_i32 = arith.constant 0 : i32
    %c0_i32_0 = arith.constant 0 : i32
    %c0_i32_1 = arith.constant 0 : i32
    %c0_i32_2 = arith.constant 0 : i32
    return %arg1, %c0_i32, %c0_i32_0, %c0_i32_1 : i32, i32, i32, i32
  }
  func.func @transform_4(%arg0: i32, %arg1: i32, %arg2: memref<2xi32, #tpu.memory_space<smem>>) -> (i32, i32, i32, i32) {
    %c0_i32 = arith.constant 0 : i32
    %c0_i32_0 = arith.constant 0 : i32
    %c0_i32_1 = arith.constant 0 : i32
    %c0_i32_2 = arith.constant 0 : i32
    return %arg1, %c0_i32, %c0_i32_0, %c0_i32_1 : i32, i32, i32, i32
  }
  func.func @transform_5(%arg0: i32, %arg1: i32, %arg2: memref<2xi32, #tpu.memory_space<smem>>) -> (i32, i32, i32, i32) {
    %c0_i32 = arith.constant 0 : i32
    %c0_i32_0 = arith.constant 0 : i32
    %c0_i32_1 = arith.constant 0 : i32
    %c0_i32_2 = arith.constant 0 : i32
    return %arg1, %c0_i32, %c0_i32_0, %c0_i32_1 : i32, i32, i32, i32
  }
  func.func @transform_6(%arg0: i32, %arg1: i32, %arg2: memref<2xi32, #tpu.memory_space<smem>>) -> (i32, i32, i32, i32) {
    %c0_i32 = arith.constant 0 : i32
    %c0_i32_0 = arith.constant 0 : i32
    %c0_i32_1 = arith.constant 0 : i32
    %c0_i32_2 = arith.constant 0 : i32
    return %arg1, %c0_i32, %c0_i32_0, %c0_i32_1 : i32, i32, i32, i32
  }
  func.func @transform_7(%arg0: i32, %arg1: i32, %arg2: memref<2xi32, #tpu.memory_space<smem>>) -> (i32, i32, i32, i32) {
    %c0_i32 = arith.constant 0 : i32
    %c0_i32_0 = arith.constant 0 : i32
    %c0_i32_1 = arith.constant 0 : i32
    %c0_i32_2 = arith.constant 0 : i32
    return %arg1, %c0_i32, %c0_i32_0, %c0_i32_1 : i32, i32, i32, i32
  }
  func.func @transform_8(%arg0: i32, %arg1: i32, %arg2: memref<2xi32, #tpu.memory_space<smem>>) -> (i32, i32, i32) {
    %c0_i32 = arith.constant 0 : i32
    %c0_i32_0 = arith.constant 0 : i32
    %c0_i32_1 = arith.constant 0 : i32
    return %arg1, %c0_i32, %c0_i32_0 : i32, i32, i32
  }
  func.func @transform_9(%arg0: i32, %arg1: i32, %arg2: memref<2xi32, #tpu.memory_space<smem>>) -> (i32, i32, i32) {
    %c0_i32 = arith.constant 0 : i32
    %c0_i32_0 = arith.constant 0 : i32
    %c0_i32_1 = arith.constant 0 : i32
    return %arg1, %c0_i32, %c0_i32_0 : i32, i32, i32
  }
  func.func @transform_10(%arg0: i32, %arg1: i32, %arg2: memref<2xi32, #tpu.memory_space<smem>>) -> (i32, i32, i32) {
    %c0_i32 = arith.constant 0 : i32
    %c0_i32_0 = arith.constant 0 : i32
    %c0_i32_1 = arith.constant 0 : i32
    return %arg1, %c0_i32, %c0_i32_0 : i32, i32, i32
  }
  func.func @transform_11(%arg0: i32, %arg1: i32, %arg2: memref<2xi32, #tpu.memory_space<smem>>) -> (i32, i32, i32) {
    %c0_i32 = arith.constant 0 : i32
    %c0_i32_0 = arith.constant 0 : i32
    %c0_i32_1 = arith.constant 0 : i32
    return %arg1, %c0_i32, %c0_i32_0 : i32, i32, i32
  }
  func.func @transform_12(%arg0: i32, %arg1: i32, %arg2: memref<2xi32, #tpu.memory_space<smem>>) -> (i32, i32, i32) {
    %c0_i32 = arith.constant 0 : i32
    %c0_i32_0 = arith.constant 0 : i32
    %c0_i32_1 = arith.constant 0 : i32
    return %arg0, %c0_i32, %c0_i32_0 : i32, i32, i32
  }
}

</mosaic_0001>

<llo_original>
// kernel: tpu_custom_call.1
$region0: #{tpu_custom_call.1}
  #allocation0 [shape = 'u32[]', space=smem, size = 0x4, offset = 0x4, fixed_abs, tag = 'smem constant byte address 0x4 - core index']
  #allocation1 [shape = 'u32[144,128]{1,0:T(1,128)}', space=vmem, size = 0x12000, scoped, tag = 'internal scratch']
  #allocation2 [shape = 'f32[1,8,8]{2,1,0:T(8,128)}', space=vmem, size = 0x1000, scoped, tag = 'scratch operand']
  #allocation3 [shape = 'f32[8,1]{1,0:T(8,128)}', space=vmem, size = 0x1000, scoped, tag = 'scratch operand']
  #allocation4 [shape = 'f32[8,32]{1,0:T(8,128)}', space=vmem, size = 0x1000, scoped, tag = 'scratch operand']
  #allocation5 [shape = 's32[1]{0}', space=sflag, size = 0x4, scoped, tag = 'scoped memory for tpu_custom_call.1']
  #allocation6 [shape = 'u8[512]{0}', space=smem, size = 0x200, scoped, tag = 'prefetched SMEM operand 0']
  %s0 = inlined_call_operand.vmem [shape: s32[2], index: 0, kind: input, shape index: {}]
  %s1 = inlined_call_operand.vmem [shape: f32[2,8,32], index: 1, kind: input, shape index: {}]
  %s2 = inlined_call_operand.vmem [shape: bf16[2,2,32,8], index: 2, kind: input, shape index: {}]
  %s3 = inlined_call_operand.vmem [shape: bf16[2,2,32,8], index: 3, kind: input, shape index: {}]
  %s4 = inlined_call_operand.vmem [shape: bf16[2,2,32,8], index: 4, kind: input, shape index: {}]
  %s5 = inlined_call_operand.vmem [shape: f32[2,2,1,8], index: 5, kind: input, shape index: {}]
  %s6 = inlined_call_operand.vmem [shape: f32[2,2,1,8], index: 6, kind: input, shape index: {}]
  %s7 = inlined_call_operand.vmem [shape: f32[2,2,1,8], index: 7, kind: input, shape index: {}]
  %s8 = inlined_call_operand.vmem [shape: bf16[2,2,8,32], index: 8, kind: input, shape index: {}]
  %s9 = inlined_call_operand.vmem [shape: bf16[2,32,64], index: 9, kind: input, shape index: {}]
  %s10 = inlined_call_operand.vmem [shape: f32[2,1,64], index: 10, kind: input, shape index: {}]
  %s11 = inlined_call_operand.vmem [shape: bf16[2,64,32], index: 11, kind: input, shape index: {}]
  %s12 = inlined_call_operand.vmem [shape: f32[2,6,32], index: 12, kind: input, shape index: {}]
  %s13 = inlined_call_operand.hbm [shape: f32[2,8,32], index: 13, kind: output, shape index: {}]
  %s14 = sld [smem:[#allocation0]]
  $region89: #{tpu_custom_call.1} parent=0
    _
  %s16 = ssub.s32 1, %s14
  %s17 = scalar_select 0, %s16, %s14
  %s18 = sshll.u32 %s0, 4
  %s19 = int_to_ptr.vmem [resolvable:$true] %s18
  %21 = dma.vmem_to_smem %s19, 16, [#allocation6], [#allocation5]
  %22 = dma.done [#allocation5], 16
  %23 = sfence
  $region1: #{tpu_custom_call.1} parent=0
    #allocation7 [shape = 'u8[8192]{0}', space=vmem, size = 0x2000, scoped, tag = 'output window, operand 0']
    #allocation8 [shape = 's32[2]{0}', space=sflag, size = 0x8, scoped, tag = 'scoped memory for tpu_custom_call.1']
    %24 = vsyncpa [#allocation8], 0
    %s25 = scalar_lea.sflag [#allocation8], 1
    %26 = vsyncpa %s25, 0
    loop: start=0, step=1, limit=6
    $region2: #{tpu_custom_call.1} parent=1 // loop_pre_header
      _
    $region3: #{tpu_custom_call.1} parent=1 // loop_header
      %s28 = sphi 0, %s32
      %p29 = scmp.ge.s32.totalorder %s28, 6
      %s35 = sphi 0, %s47
      %s36 = sphi 0, %s43
      %s37 = sphi 0, %s35
      %s38 = sphi 0, %s36
      %s39 = sphi 0, %s37
      %s40 = sphi 0, %s38
      %s50 = sphi 0, %s52
      %s53 = sphi 0, %s50
      %s54 = sphi 0, %s53
      %s70 = sphi 0, %s54
      %s76 = sphi 0, %s78
      %s79 = sphi 0, %s76
      %s80 = sphi 0, %s79
      %s96 = sphi 0, %s80
      %s102 = sphi 0, %s104
      %s105 = sphi 0, %s102
      %s106 = sphi 0, %s105
      %s122 = sphi 0, %s106
      %s128 = sphi 0, %s130
      %s131 = sphi 0, %s128
      %s132 = sphi 0, %s131
      %s148 = sphi 0, %s132
      %s154 = sphi 0, %s156
      %s157 = sphi 0, %s154
      %s158 = sphi 0, %s157
      %s174 = sphi 0, %s158
      %s180 = sphi 0, %s182
      %s183 = sphi 0, %s180
      %s184 = sphi 0, %s183
      %s200 = sphi 0, %s184
      %s206 = sphi 0, %s208
      %s209 = sphi 0, %s206
      %s210 = sphi 0, %s209
      %s226 = sphi 0, %s210
      %s232 = sphi 0, %s234
      %s235 = sphi 0, %s232
      %s236 = sphi 0, %s235
      %s252 = sphi 0, %s236
      %s258 = sphi 0, %s260
      %s261 = sphi 0, %s258
      %s262 = sphi 0, %s261
      %s278 = sphi 0, %s262
      %s284 = sphi 0, %s286
      %s287 = sphi 0, %s284
      %s288 = sphi 0, %s287
      %s304 = sphi 0, %s288
      %s310 = sphi 0, %s312
      %s313 = sphi 0, %s310
      %s314 = sphi 0, %s313
      %s330 = sphi 0, %s314
      %s336 = sphi 0, %s338
      %s339 = sphi 0, %s336
      %s340 = sphi 0, %s339
      %s356 = sphi 0, %s340
      %s362 = sphi 0, %s364
      %s365 = sphi 0, %s362
      %s366 = sphi 0, %s365
      %s382 = sphi 0, %s366
    $region4: #{tpu_custom_call.1} parent=1 // loop_header_branch
      %31 = sbr.rel (%p29) target = $region8
    $region5: #{tpu_custom_call.1} parent=1 // loop_body
      %s33 = ssub.s32 %s28, 1
      %s34 = ssub.s32 %s28, 2
      %s41 = sadd.s32 1, %s36
      %p42 = scmp.ge.s32.totalorder %s41, 2
      %s43 = scalar_select %p42, 0, %s41
      %s44 = sadd.s32 1, %s35
      %s45 = scalar_select %p42, %s44, %s35
      %p46 = scmp.ge.s32.totalorder %s45, 2
      %s47 = scalar_select %p46, 0, %s45
      %s48 = ssub.s32 %s35, %s47
      %p49 = scmp.eq.s32.totalorder %s48, 0
      %s51 = sadd.s32 %s50, 1
      %s52 = scalar_select %p49, %s50, %s51
      %p55 = pneg %p49
      %p56 = scmp.eq.s32.totalorder %s28, 3
      %p57 = por %p55, %p56
      %p58 = scmp.ne.s32.totalorder %s50, %s53
      %p59 = scmp.eq.s32.totalorder %s28, 0
      %p60 = por %p58, %p59
      %p61 = scmp.ne.s32.totalorder %s50, %s53
      %p62 = scmp.eq.s32.totalorder %s33, 3
      %p63 = por %p61, %p62
      %p64 = scmp.ne.s32.totalorder %s53, %s54
      %p65 = scmp.eq.s32.totalorder %s33, 0
      %p66 = por %p64, %p65
      %p67 = scmp.ne.s32.totalorder %s53, %s54
      %p68 = scmp.eq.s32.totalorder %s34, 3
      %p69 = por %p67, %p68
      %p71 = scmp.ne.s32.totalorder %s54, %s70
      %p72 = scmp.eq.s32.totalorder %s34, 0
      %p73 = por %p71, %p72
      %s74 = ssub.s32 %s36, %s43
      %p75 = scmp.eq.s32.totalorder %s74, 0
      %s77 = sadd.s32 %s76, 1
      %s78 = scalar_select %p75, %s76, %s77
      %p81 = pneg %p75
      %p82 = scmp.eq.s32.totalorder %s28, 3
      %p83 = por %p81, %p82
      %p84 = scmp.ne.s32.totalorder %s76, %s79
      %p85 = scmp.eq.s32.totalorder %s28, 0
      %p86 = por %p84, %p85
      %p87 = scmp.ne.s32.totalorder %s76, %s79
      %p88 = scmp.eq.s32.totalorder %s33, 3
      %p89 = por %p87, %p88
      %p90 = scmp.ne.s32.totalorder %s79, %s80
      %p91 = scmp.eq.s32.totalorder %s33, 0
      %p92 = por %p90, %p91
      %p93 = scmp.ne.s32.totalorder %s79, %s80
      %p94 = scmp.eq.s32.totalorder %s34, 3
      %p95 = por %p93, %p94
      %p97 = scmp.ne.s32.totalorder %s80, %s96
      %p98 = scmp.eq.s32.totalorder %s34, 0
      %p99 = por %p97, %p98
      %s100 = ssub.s32 %s36, %s43
      %p101 = scmp.eq.s32.totalorder %s100, 0
      %s103 = sadd.s32 %s102, 1
      %s104 = scalar_select %p101, %s102, %s103
      %p107 = pneg %p101
      %p108 = scmp.eq.s32.totalorder %s28, 3
      %p109 = por %p107, %p108
      %p110 = scmp.ne.s32.totalorder %s102, %s105
      %p111 = scmp.eq.s32.totalorder %s28, 0
      %p112 = por %p110, %p111
      %p113 = scmp.ne.s32.totalorder %s102, %s105
      %p114 = scmp.eq.s32.totalorder %s33, 3
      %p115 = por %p113, %p114
      %p116 = scmp.ne.s32.totalorder %s105, %s106
      %p117 = scmp.eq.s32.totalorder %s33, 0
      %p118 = por %p116, %p117
      %p119 = scmp.ne.s32.totalorder %s105, %s106
      %p120 = scmp.eq.s32.totalorder %s34, 3
      %p121 = por %p119, %p120
      %p123 = scmp.ne.s32.totalorder %s106, %s122
      %p124 = scmp.eq.s32.totalorder %s34, 0
      %p125 = por %p123, %p124
      %s126 = ssub.s32 %s36, %s43
      %p127 = scmp.eq.s32.totalorder %s126, 0
      %s129 = sadd.s32 %s128, 1
      %s130 = scalar_select %p127, %s128, %s129
      %p133 = pneg %p127
      %p134 = scmp.eq.s32.totalorder %s28, 3
      %p135 = por %p133, %p134
      %p136 = scmp.ne.s32.totalorder %s128, %s131
      %p137 = scmp.eq.s32.totalorder %s28, 0
      %p138 = por %p136, %p137
      %p139 = scmp.ne.s32.totalorder %s128, %s131
      %p140 = scmp.eq.s32.totalorder %s33, 3
      %p141 = por %p139, %p140
      %p142 = scmp.ne.s32.totalorder %s131, %s132
      %p143 = scmp.eq.s32.totalorder %s33, 0
      %p144 = por %p142, %p143
      %p145 = scmp.ne.s32.totalorder %s131, %s132
      %p146 = scmp.eq.s32.totalorder %s34, 3
      %p147 = por %p145, %p146
      %p149 = scmp.ne.s32.totalorder %s132, %s148
      %p150 = scmp.eq.s32.totalorder %s34, 0
      %p151 = por %p149, %p150
      %s152 = ssub.s32 %s36, %s43
      %p153 = scmp.eq.s32.totalorder %s152, 0
      %s155 = sadd.s32 %s154, 1
      %s156 = scalar_select %p153, %s154, %s155
      %p159 = pneg %p153
      %p160 = scmp.eq.s32.totalorder %s28, 3
      %p161 = por %p159, %p160
      %p162 = scmp.ne.s32.totalorder %s154, %s157
      %p163 = scmp.eq.s32.totalorder %s28, 0
      %p164 = por %p162, %p163
      %p165 = scmp.ne.s32.totalorder %s154, %s157
      %p166 = scmp.eq.s32.totalorder %s33, 3
      %p167 = por %p165, %p166
      %p168 = scmp.ne.s32.totalorder %s157, %s158
      %p169 = scmp.eq.s32.totalorder %s33, 0
      %p170 = por %p168, %p169
      %p171 = scmp.ne.s32.totalorder %s157, %s158
      %p172 = scmp.eq.s32.totalorder %s34, 3
      %p173 = por %p171, %p172
      %p175 = scmp.ne.s32.totalorder %s158, %s174
      %p176 = scmp.eq.s32.totalorder %s34, 0
      %p177 = por %p175, %p176
      %s178 = ssub.s32 %s36, %s43
      %p179 = scmp.eq.s32.totalorder %s178, 0
      %s181 = sadd.s32 %s180, 1
      %s182 = scalar_select %p179, %s180, %s181
      %p185 = pneg %p179
      %p186 = scmp.eq.s32.totalorder %s28, 3
      %p187 = por %p185, %p186
      %p188 = scmp.ne.s32.totalorder %s180, %s183
      %p189 = scmp.eq.s32.totalorder %s28, 0
      %p190 = por %p188, %p189
      %p191 = scmp.ne.s32.totalorder %s180, %s183
      %p192 = scmp.eq.s32.totalorder %s33, 3
      %p193 = por %p191, %p192
      %p194 = scmp.ne.s32.totalorder %s183, %s184
      %p195 = scmp.eq.s32.totalorder %s33, 0
      %p196 = por %p194, %p195
      %p197 = scmp.ne.s32.totalorder %s183, %s184
      %p198 = scmp.eq.s32.totalorder %s34, 3
      %p199 = por %p197, %p198
      %p201 = scmp.ne.s32.totalorder %s184, %s200
      %p202 = scmp.eq.s32.totalorder %s34, 0
      %p203 = por %p201, %p202
      %s204 = ssub.s32 %s36, %s43
      %p205 = scmp.eq.s32.totalorder %s204, 0
      %s207 = sadd.s32 %s206, 1
      %s208 = scalar_select %p205, %s206, %s207
      %p211 = pneg %p205
      %p212 = scmp.eq.s32.totalorder %s28, 3
      %p213 = por %p211, %p212
      %p214 = scmp.ne.s32.totalorder %s206, %s209
      %p215 = scmp.eq.s32.totalorder %s28, 0
      %p216 = por %p214, %p215
      %p217 = scmp.ne.s32.totalorder %s206, %s209
      %p218 = scmp.eq.s32.totalorder %s33, 3
      %p219 = por %p217, %p218
      %p220 = scmp.ne.s32.totalorder %s209, %s210
      %p221 = scmp.eq.s32.totalorder %s33, 0
      %p222 = por %p220, %p221
      %p223 = scmp.ne.s32.totalorder %s209, %s210
      %p224 = scmp.eq.s32.totalorder %s34, 3
      %p225 = por %p223, %p224
      %p227 = scmp.ne.s32.totalorder %s210, %s226
      %p228 = scmp.eq.s32.totalorder %s34, 0
      %p229 = por %p227, %p228
      %s230 = ssub.s32 %s36, %s43
      %p231 = scmp.eq.s32.totalorder %s230, 0
      %s233 = sadd.s32 %s232, 1
      %s234 = scalar_select %p231, %s232, %s233
      %p237 = pneg %p231
      %p238 = scmp.eq.s32.totalorder %s28, 3
      %p239 = por %p237, %p238
      %p240 = scmp.ne.s32.totalorder %s232, %s235
      %p241 = scmp.eq.s32.totalorder %s28, 0
      %p242 = por %p240, %p241
      %p243 = scmp.ne.s32.totalorder %s232, %s235
      %p244 = scmp.eq.s32.totalorder %s33, 3
      %p245 = por %p243, %p244
      %p246 = scmp.ne.s32.totalorder %s235, %s236
      %p247 = scmp.eq.s32.totalorder %s33, 0
      %p248 = por %p246, %p247
      %p249 = scmp.ne.s32.totalorder %s235, %s236
      %p250 = scmp.eq.s32.totalorder %s34, 3
      %p251 = por %p249, %p250
      %p253 = scmp.ne.s32.totalorder %s236, %s252
      %p254 = scmp.eq.s32.totalorder %s34, 0
      %p255 = por %p253, %p254
      %s256 = ssub.s32 %s36, %s43
      %p257 = scmp.eq.s32.totalorder %s256, 0
      %s259 = sadd.s32 %s258, 1
      %s260 = scalar_select %p257, %s258, %s259
      %p263 = pneg %p257
      %p264 = scmp.eq.s32.totalorder %s28, 3
      %p265 = por %p263, %p264
      %p266 = scmp.ne.s32.totalorder %s258, %s261
      %p267 = scmp.eq.s32.totalorder %s28, 0
      %p268 = por %p266, %p267
      %p269 = scmp.ne.s32.totalorder %s258, %s261
      %p270 = scmp.eq.s32.totalorder %s33, 3
      %p271 = por %p269, %p270
      %p272 = scmp.ne.s32.totalorder %s261, %s262
      %p273 = scmp.eq.s32.totalorder %s33, 0
      %p274 = por %p272, %p273
      %p275 = scmp.ne.s32.totalorder %s261, %s262
      %p276 = scmp.eq.s32.totalorder %s34, 3
      %p277 = por %p275, %p276
      %p279 = scmp.ne.s32.totalorder %s262, %s278
      %p280 = scmp.eq.s32.totalorder %s34, 0
      %p281 = por %p279, %p280
      %s282 = ssub.s32 %s36, %s43
      %p283 = scmp.eq.s32.totalorder %s282, 0
      %s285 = sadd.s32 %s284, 1
      %s286 = scalar_select %p283, %s284, %s285
      %p289 = pneg %p283
      %p290 = scmp.eq.s32.totalorder %s28, 3
      %p291 = por %p289, %p290
      %p292 = scmp.ne.s32.totalorder %s284, %s287
      %p293 = scmp.eq.s32.totalorder %s28, 0
      %p294 = por %p292, %p293
      %p295 = scmp.ne.s32.totalorder %s284, %s287
      %p296 = scmp.eq.s32.totalorder %s33, 3
      %p297 = por %p295, %p296
      %p298 = scmp.ne.s32.totalorder %s287, %s288
      %p299 = scmp.eq.s32.totalorder %s33, 0
      %p300 = por %p298, %p299
      %p301 = scmp.ne.s32.totalorder %s287, %s288
      %p302 = scmp.eq.s32.totalorder %s34, 3
      %p303 = por %p301, %p302
      %p305 = scmp.ne.s32.totalorder %s288, %s304
      %p306 = scmp.eq.s32.totalorder %s34, 0
      %p307 = por %p305, %p306
      %s308 = ssub.s32 %s36, %s43
      %p309 = scmp.eq.s32.totalorder %s308, 0
      %s311 = sadd.s32 %s310, 1
      %s312 = scalar_select %p309, %s310, %s311
      %p315 = pneg %p309
      %p316 = scmp.eq.s32.totalorder %s28, 3
      %p317 = por %p315, %p316
      %p318 = scmp.ne.s32.totalorder %s310, %s313
      %p319 = scmp.eq.s32.totalorder %s28, 0
      %p320 = por %p318, %p319
      %p321 = scmp.ne.s32.totalorder %s310, %s313
      %p322 = scmp.eq.s32.totalorder %s33, 3
      %p323 = por %p321, %p322
      %p324 = scmp.ne.s32.totalorder %s313, %s314
      %p325 = scmp.eq.s32.totalorder %s33, 0
      %p326 = por %p324, %p325
      %p327 = scmp.ne.s32.totalorder %s313, %s314
      %p328 = scmp.eq.s32.totalorder %s34, 3
      %p329 = por %p327, %p328
      %p331 = scmp.ne.s32.totalorder %s314, %s330
      %p332 = scmp.eq.s32.totalorder %s34, 0
      %p333 = por %p331, %p332
      %s334 = ssub.s32 %s36, %s43
      %p335 = scmp.eq.s32.totalorder %s334, 0
      %s337 = sadd.s32 %s336, 1
      %s338 = scalar_select %p335, %s336, %s337
      %p341 = pneg %p335
      %p342 = scmp.eq.s32.totalorder %s28, 3
      %p343 = por %p341, %p342
      %p344 = scmp.ne.s32.totalorder %s336, %s339
      %p345 = scmp.eq.s32.totalorder %s28, 0
      %p346 = por %p344, %p345
      %p347 = scmp.ne.s32.totalorder %s336, %s339
      %p348 = scmp.eq.s32.totalorder %s33, 3
      %p349 = por %p347, %p348
      %p350 = scmp.ne.s32.totalorder %s339, %s340
      %p351 = scmp.eq.s32.totalorder %s33, 0
      %p352 = por %p350, %p351
      %p353 = scmp.ne.s32.totalorder %s339, %s340
      %p354 = scmp.eq.s32.totalorder %s34, 3
      %p355 = por %p353, %p354
      %p357 = scmp.ne.s32.totalorder %s340, %s356
      %p358 = scmp.eq.s32.totalorder %s34, 0
      %p359 = por %p357, %p358
      %s360 = ssub.s32 %s35, %s47
      %p361 = scmp.eq.s32.totalorder %s360, 0
      %s363 = sadd.s32 %s362, 1
      %s364 = scalar_select %p361, %s362, %s363
      %p367 = pneg %p361
      %p368 = scmp.eq.s32.totalorder %s28, 3
      %p369 = por %p367, %p368
      %p370 = scmp.ne.s32.totalorder %s362, %s365
      %p371 = scmp.eq.s32.totalorder %s28, 0
      %p372 = por %p370, %p371
      %p373 = scmp.ne.s32.totalorder %s362, %s365
      %p374 = scmp.eq.s32.totalorder %s33, 3
      %p375 = por %p373, %p374
      %p376 = scmp.ne.s32.totalorder %s365, %s366
      %p377 = scmp.eq.s32.totalorder %s33, 0
      %p378 = por %p376, %p377
      %p379 = scmp.ne.s32.totalorder %s365, %s366
      %p380 = scmp.eq.s32.totalorder %s34, 3
      %p381 = por %p379, %p380
      %p383 = scmp.ne.s32.totalorder %s366, %s382
      %p384 = scmp.eq.s32.totalorder %s34, 0
      %p385 = por %p383, %p384
      %p386 = scmp.le.s32.totalorder 1, %s28
      %p387 = scmp.lt.s32.totalorder %s28, 5
      %p388 = pnand %p386, %p387
      %p389 = pneg %p388
      // Predicated region
      $region9: #{tpu_custom_call.1} parent=5 // pred_check
        _
      $region10: #{tpu_custom_call.1} parent=5 // pred_check_branch
        %391 = sbr.rel (%p388) target = $region12
      $region11: #{tpu_custom_call.1} parent=5 // pred_region
        %s392 = ssub.s32 %s28, 1
      $region12: #{tpu_custom_call.1} parent=5 // pred_fallthru
        _
      %p393 = scmp.lt.s32.totalorder %s28, 4
      // Predicated region
      $region13: #{tpu_custom_call.1} parent=5 // pred_check
        %p394 = pneg %p393
      $region14: #{tpu_custom_call.1} parent=5 // pred_check_branch
        %396 = sbr.rel (%p394) target = $region16
      $region15: #{tpu_custom_call.1} parent=5 // pred_region
        // Predicated region
        $region17: #{tpu_custom_call.1} parent=15 // pred_check
          %p397 = pneg %p60
        $region18: #{tpu_custom_call.1} parent=15 // pred_check_branch
          %399 = sbr.rel (%p397) target = $region20
        $region19: #{tpu_custom_call.1} parent=15 // pred_region
          %p400 = scmp.lt.s32.totalorder %s35, 1
          %s401 = scalar_select %p400, %s35, 1
          %s402 = smul.addr %s401, 8
          %s403 = scalar_lea.vmem %s1, %s402
        $region20: #{tpu_custom_call.1} parent=15 // pred_fallthru
          _
        // Predicated region
        $region21: #{tpu_custom_call.1} parent=15 // pred_check
          %p404 = pneg %p86
        $region22: #{tpu_custom_call.1} parent=15 // pred_check_branch
          %406 = sbr.rel (%p404) target = $region24
        $region23: #{tpu_custom_call.1} parent=15 // pred_region
          %p407 = scmp.lt.s32.totalorder %s36, 1
          %s408 = scalar_select %p407, %s36, 1
          %s409 = smul.addr %s408, 8
          %s410 = smul.addr %s409, 4
          %s411 = scalar_lea.vmem %s2, %s410
        $region24: #{tpu_custom_call.1} parent=15 // pred_fallthru
          _
        // Predicated region
        $region25: #{tpu_custom_call.1} parent=15 // pred_check
          %p412 = pneg %p112
        $region26: #{tpu_custom_call.1} parent=15 // pred_check_branch
          %414 = sbr.rel (%p412) target = $region28
        $region27: #{tpu_custom_call.1} parent=15 // pred_region
          %p415 = scmp.lt.s32.totalorder %s36, 1
          %s416 = scalar_select %p415, %s36, 1
          %s417 = smul.addr %s416, 8
          %s418 = smul.addr %s417, 4
          %s419 = scalar_lea.vmem %s3, %s418
        $region28: #{tpu_custom_call.1} parent=15 // pred_fallthru
          _
        // Predicated region
        $region29: #{tpu_custom_call.1} parent=15 // pred_check
          %p420 = pneg %p138
        $region30: #{tpu_custom_call.1} parent=15 // pred_check_branch
          %422 = sbr.rel (%p420) target = $region32
        $region31: #{tpu_custom_call.1} parent=15 // pred_region
          %p423 = scmp.lt.s32.totalorder %s36, 1
          %s424 = scalar_select %p423, %s36, 1
          %s425 = smul.addr %s424, 8
          %s426 = smul.addr %s425, 4
          %s427 = scalar_lea.vmem %s4, %s426
        $region32: #{tpu_custom_call.1} parent=15 // pred_fallthru
          _
        // Predicated region
        $region33: #{tpu_custom_call.1} parent=15 // pred_check
          %p428 = pneg %p164
        $region34: #{tpu_custom_call.1} parent=15 // pred_check_branch
          %430 = sbr.rel (%p428) target = $region36
        $region35: #{tpu_custom_call.1} parent=15 // pred_region
          %p431 = scmp.lt.s32.totalorder %s36, 1
          %s432 = scalar_select %p431, %s36, 1
          %s433 = smul.addr %s432, 2
          %s434 = scalar_lea.vmem %s5, %s433
        $region36: #{tpu_custom_call.1} parent=15 // pred_fallthru
          _
        // Predicated region
        $region37: #{tpu_custom_call.1} parent=15 // pred_check
          %p435 = pneg %p190
        $region38: #{tpu_custom_call.1} parent=15 // pred_check_branch
          %437 = sbr.rel (%p435) target = $region40
        $region39: #{tpu_custom_call.1} parent=15 // pred_region
          %p438 = scmp.lt.s32.totalorder %s36, 1
          %s439 = scalar_select %p438, %s36, 1
          %s440 = smul.addr %s439, 2
          %s441 = scalar_lea.vmem %s6, %s440
        $region40: #{tpu_custom_call.1} parent=15 // pred_fallthru
          _
        // Predicated region
        $region41: #{tpu_custom_call.1} parent=15 // pred_check
          %p442 = pneg %p216
        $region42: #{tpu_custom_call.1} parent=15 // pred_check_branch
          %444 = sbr.rel (%p442) target = $region44
        $region43: #{tpu_custom_call.1} parent=15 // pred_region
          %p445 = scmp.lt.s32.totalorder %s36, 1
          %s446 = scalar_select %p445, %s36, 1
          %s447 = smul.addr %s446, 2
          %s448 = scalar_lea.vmem %s7, %s447
        $region44: #{tpu_custom_call.1} parent=15 // pred_fallthru
          _
        // Predicated region
        $region45: #{tpu_custom_call.1} parent=15 // pred_check
          %p449 = pneg %p242
        $region46: #{tpu_custom_call.1} parent=15 // pred_check_branch
          %451 = sbr.rel (%p449) target = $region48
        $region47: #{tpu_custom_call.1} parent=15 // pred_region
          %p452 = scmp.lt.s32.totalorder %s36, 1
          %s453 = scalar_select %p452, %s36, 1
          %s454 = smul.addr %s453, 2
          %s455 = smul.addr %s454, 4
          %s456 = scalar_lea.vmem %s8, %s455
        $region48: #{tpu_custom_call.1} parent=15 // pred_fallthru
          _
        // Predicated region
        $region49: #{tpu_custom_call.1} parent=15 // pred_check
          %p457 = pneg %p268
        $region50: #{tpu_custom_call.1} parent=15 // pred_check_branch
          %459 = sbr.rel (%p457) target = $region52
        $region51: #{tpu_custom_call.1} parent=15 // pred_region
          %p460 = scmp.lt.s32.totalorder %s36, 1
          %s461 = scalar_select %p460, %s36, 1
          %s462 = smul.addr %s461, 4
          %s463 = smul.addr %s462, 4
          %s464 = scalar_lea.vmem %s9, %s463
        $region52: #{tpu_custom_call.1} parent=15 // pred_fallthru
          _
        // Predicated region
        $region53: #{tpu_custom_call.1} parent=15 // pred_check
          %p465 = pneg %p294
        $region54: #{tpu_custom_call.1} parent=15 // pred_check_branch
          %467 = sbr.rel (%p465) target = $region56
        $region55: #{tpu_custom_call.1} parent=15 // pred_region
          %p468 = scmp.lt.s32.totalorder %s36, 1
          %s469 = scalar_select %p468, %s36, 1
          %s470 = scalar_lea.vmem %s10, %s469
        $region56: #{tpu_custom_call.1} parent=15 // pred_fallthru
          _
        // Predicated region
        $region57: #{tpu_custom_call.1} parent=15 // pred_check
          %p471 = pneg %p320
        $region58: #{tpu_custom_call.1} parent=15 // pred_check_branch
          %473 = sbr.rel (%p471) target = $region60
        $region59: #{tpu_custom_call.1} parent=15 // pred_region
          %p474 = scmp.lt.s32.totalorder %s36, 1
          %s475 = scalar_select %p474, %s36, 1
          %s476 = smul.addr %s475, 8
          %s477 = smul.addr %s476, 4
          %s478 = scalar_lea.vmem %s11, %s477
        $region60: #{tpu_custom_call.1} parent=15 // pred_fallthru
          _
        // Predicated region
        $region61: #{tpu_custom_call.1} parent=15 // pred_check
          %p479 = pneg %p346
        $region62: #{tpu_custom_call.1} parent=15 // pred_check_branch
          %481 = sbr.rel (%p479) target = $region64
        $region63: #{tpu_custom_call.1} parent=15 // pred_region
          %p482 = scmp.lt.s32.totalorder %s36, 1
          %s483 = scalar_select %p482, %s36, 1
          %s484 = smul.addr %s483, 8
          %s485 = scalar_lea.vmem %s12, %s484
        $region64: #{tpu_custom_call.1} parent=15 // pred_fallthru
          _
      $region16: #{tpu_custom_call.1} parent=5 // pred_fallthru
        _
      %p486 = scmp.le.s32.totalorder 1, %s28
      %p487 = scmp.lt.s32.totalorder %s28, 5
      %p488 = pnand %p486, %p487
      %p489 = pneg %p488
      // Predicated region
      $region65: #{tpu_custom_call.1} parent=5 // pred_check
        _
      $region66: #{tpu_custom_call.1} parent=5 // pred_check_branch
        %491 = sbr.rel (%p488) target = $region68
      $region67: #{tpu_custom_call.1} parent=5 // pred_region
        %s492 = ssub.s32 %s28, 1
        %p493 = scmp.lt.s32.totalorder %s37, 1
        %s494 = scalar_select %p493, %s37, 1
        %s495 = smul.addr %s494, 8
        %s496 = scalar_lea.vmem %s1, %s495
        %p497 = pneg %p66
        %p498 = pneg %p63
        %p499 = scmp.lt.s32.totalorder %s38, 1
        %s500 = scalar_select %p499, %s38, 1
        %s501 = smul.addr %s500, 8
        %s502 = smul.addr %s501, 4
        %s503 = scalar_lea.vmem %s2, %s502
        %p504 = pneg %p92
        %p505 = pneg %p89
        %p506 = scmp.lt.s32.totalorder %s38, 1
        %s507 = scalar_select %p506, %s38, 1
        %s508 = smul.addr %s507, 8
        %s509 = smul.addr %s508, 4
        %s510 = scalar_lea.vmem %s3, %s509
        %p511 = pneg %p118
        %p512 = pneg %p115
        %p513 = scmp.lt.s32.totalorder %s38, 1
        %s514 = scalar_select %p513, %s38, 1
        %s515 = smul.addr %s514, 8
        %s516 = smul.addr %s515, 4
        %s517 = scalar_lea.vmem %s4, %s516
        %p518 = pneg %p144
        %p519 = pneg %p141
        %p520 = scmp.lt.s32.totalorder %s38, 1
        %s521 = scalar_select %p520, %s38, 1
        %s522 = smul.addr %s521, 2
        %s523 = scalar_lea.vmem %s5, %s522
        %p524 = pneg %p170
        %p525 = pneg %p167
        %p526 = scmp.lt.s32.totalorder %s38, 1
        %s527 = scalar_select %p526, %s38, 1
        %s528 = smul.addr %s527, 2
        %s529 = scalar_lea.vmem %s6, %s528
        %p530 = pneg %p196
        %p531 = pneg %p193
        %p532 = scmp.lt.s32.totalorder %s38, 1
        %s533 = scalar_select %p532, %s38, 1
        %s534 = smul.addr %s533, 2
        %s535 = scalar_lea.vmem %s7, %s534
        %p536 = pneg %p222
        %p537 = pneg %p219
        %p538 = scmp.lt.s32.totalorder %s38, 1
        %s539 = scalar_select %p538, %s38, 1
        %s540 = smul.addr %s539, 2
        %s541 = smul.addr %s540, 4
        %s542 = scalar_lea.vmem %s8, %s541
        %p543 = pneg %p248
        %p544 = pneg %p245
        %p545 = scmp.lt.s32.totalorder %s38, 1
        %s546 = scalar_select %p545, %s38, 1
        %s547 = smul.addr %s546, 4
        %s548 = smul.addr %s547, 4
        %s549 = scalar_lea.vmem %s9, %s548
        %p550 = pneg %p274
        %p551 = pneg %p271
        %p552 = scmp.lt.s32.totalorder %s38, 1
        %s553 = scalar_select %p552, %s38, 1
        %s554 = scalar_lea.vmem %s10, %s553
        %p555 = pneg %p300
        %p556 = pneg %p297
        %p557 = scmp.lt.s32.totalorder %s38, 1
        %s558 = scalar_select %p557, %s38, 1
        %s559 = smul.addr %s558, 8
        %s560 = smul.addr %s559, 4
        %s561 = scalar_lea.vmem %s11, %s560
        %p562 = pneg %p326
        %p563 = pneg %p323
        %p564 = scmp.lt.s32.totalorder %s38, 1
        %s565 = scalar_select %p564, %s38, 1
        %s566 = smul.addr %s565, 8
        %s567 = scalar_lea.vmem %s12, %s566
        %p568 = pneg %p352
        %p569 = pneg %p349
        %p570 = pneg %p378
        %p571 = pneg %p375
        %s572 = sand.u32 %s365, 1
        %s573 = scalar_lea.sflag [#allocation8], %s572
        %s574 = sand.u32 %s365, 1
        %s575 = smul.addr %s574, 8
        %s576 = scalar_lea.vmem [#allocation7], %s575
        %p577 = scmp.lt.s32.totalorder %s37, 1
        %s578 = scalar_select %p577, %s37, 1
        %s579 = smul.addr %s578, 8
        %s580 = scalar_lea.vmem %s1, %s579
        %p581 = scmp.lt.s32.totalorder %s38, 1
        %s582 = scalar_select %p581, %s38, 1
        %s583 = smul.addr %s582, 8
        %s584 = smul.addr %s583, 4
        %s585 = scalar_lea.vmem %s2, %s584
        %p586 = scmp.lt.s32.totalorder %s38, 1
        %s587 = scalar_select %p586, %s38, 1
        %s588 = smul.addr %s587, 8
        %s589 = smul.addr %s588, 4
        %s590 = scalar_lea.vmem %s3, %s589
        %p591 = scmp.lt.s32.totalorder %s38, 1
        %s592 = scalar_select %p591, %s38, 1
        %s593 = smul.addr %s592, 8
        %s594 = smul.addr %s593, 4
        %s595 = scalar_lea.vmem %s4, %s594
        %p596 = scmp.lt.s32.totalorder %s38, 1
        %s597 = scalar_select %p596, %s38, 1
        %s598 = smul.addr %s597, 2
        %s599 = scalar_lea.vmem %s5, %s598
        %p600 = scmp.lt.s32.totalorder %s38, 1
        %s601 = scalar_select %p600, %s38, 1
        %s602 = smul.addr %s601, 2
        %s603 = scalar_lea.vmem %s6, %s602
        %p604 = scmp.lt.s32.totalorder %s38, 1
        %s605 = scalar_select %p604, %s38, 1
        %s606 = smul.addr %s605, 2
        %s607 = scalar_lea.vmem %s7, %s606
        %p608 = scmp.lt.s32.totalorder %s38, 1
        %s609 = scalar_select %p608, %s38, 1
        %s610 = smul.addr %s609, 2
        %s611 = smul.addr %s610, 4
        %s612 = scalar_lea.vmem %s8, %s611
        %p613 = scmp.lt.s32.totalorder %s38, 1
        %s614 = scalar_select %p613, %s38, 1
        %s615 = smul.addr %s614, 4
        %s616 = smul.addr %s615, 4
        %s617 = scalar_lea.vmem %s9, %s616
        %p618 = scmp.lt.s32.totalorder %s38, 1
        %s619 = scalar_select %p618, %s38, 1
        %s620 = scalar_lea.vmem %s10, %s619
        %p621 = scmp.lt.s32.totalorder %s38, 1
        %s622 = scalar_select %p621, %s38, 1
        %s623 = smul.addr %s622, 8
        %s624 = smul.addr %s623, 4
        %s625 = scalar_lea.vmem %s11, %s624
        %p626 = scmp.lt.s32.totalorder %s38, 1
        %s627 = scalar_select %p626, %s38, 1
        %s628 = smul.addr %s627, 8
        %s629 = scalar_lea.vmem %s12, %s628
        %p631 = scmp.eq.s32.totalorder %s38, 0
        // Predicated region
        $region69: #{tpu_custom_call.1} parent=67 // pred_check
          %p632 = pneg %p631
        $region70: #{tpu_custom_call.1} parent=67 // pred_check_branch
          %634 = sbr.rel (%p632) target = $region72
        $region71: #{tpu_custom_call.1} parent=67 // pred_region
          %v635 = vld [vmem:[%s580] sm:$0xff]
          %vm636 = vcmask 261120
          %637 = vst.msk [vmem:[#allocation4] sm:$0xff] %vm636, %v635
          %v638 = vlaneseq
          %v639 = vand.u32 %v638, 127
          %v640 = vlaneseq
          %v641 = vshrl.u32 %v640, 7
          %s642 = sld [smem:[#allocation6 + %s37]]
          %v643 = vstv %s642
          %vm644 = vcmp.ge.s32.totalorder %v639, %v643
          %v645 = vsel %vm644, -1e+30, 0.0
          %vm646 = vcmask 64512
          %647 = vst.msk [vmem:[#allocation2] sm:$0xff] %vm646, %v645
          %vm648 = vcmp.lt.s32.totalorder %v641, %v643
          %v649 = vsel %vm648, 1, 0
          %v650 = vcvt.s32.f32 %v649
          %vm651 = vcmask 7168
          %652 = vst.msk [vmem:[#allocation3] sm:$0xff] %vm651, %v650
        $region72: #{tpu_custom_call.1} parent=67 // pred_fallthru
          _
        %v653 = vld [vmem:[#allocation4] sm:$0xff]
        %v654 = vpack.c.bf16 %v653, %v653
        %v655 = vld [vmem:[#allocation2] sm:$0xff]
        %v656 = vld [vmem:[#allocation3] sm:$0xff]
        %v657 = vld [vmem:[%s585] sm:$0xf]
        %v658 = vld [vmem:[%s585 + $0x4] sm:$0xf]
        %v659 = vld [vmem:[%s585 + $0x8] sm:$0xf]
        %v660 = vld [vmem:[%s585 + $0xc] sm:$0xf]
        %v661 = vld [vmem:[%s599] sm:$0x1]
        %v663 = vlaneseq
        %v664 = vshrl.u32 %v663, 7
        %v665 = vsub.s32 0, %v664
        %v666 = vrot.slane %v661, %v665
        %v672 = vunpack.c.l.b16 %v657
        %v673 = vunpack.c.l.b16 %v658
        %v674 = vunpack.c.l.b16 %v659
        %v675 = vunpack.c.l.b16 %v660
        %v676 = vpack.c.b16 %v673, %v672
        %v677 = vpack.c.b16 %v675, %v674
        %vm680 = vcmask 261120
        %v682 = vsel %vm680, %v654, 0
        %684 = vmatprep.subr.bf16.mxu0 0
        %685 = vmatpush1.bf16.msra.mxu0 0
        %686 = vmatprep.subr.bf16.mxu0 0
        %687 = vmatpush1.bf16.msra.mxu0 0
        %688 = vmatprep.subr.bf16.mxu0 0
        %689 = vmatpush1.bf16.msra.mxu0 0
        %690 = vmatprep.subr.bf16.mxu0 0
        %691 = vmatpush1.bf16.msra.mxu0 0
        %692 = vmatprep.subr.bf16.mxu0 0
        %693 = vmatpush1.bf16.msra.mxu0 0
        %694 = vmatprep.subr.bf16.mxu0 0
        %695 = vmatpush1.bf16.msra.mxu0 0
        %696 = vmatprep.subr.bf16.mxu0 0
        %697 = vmatpush1.bf16.msra.mxu0 %v677
        %698 = vmatprep.subr.bf16.mxu0 0
        %699 = vmatpush1.bf16.msra.mxu0 %v676
        %700 = vmatprep.subr.bf16.mxu0 0
        %701 = vmatpush2.bf16.msra.mxu0 0
        %702 = vmatprep.subr.bf16.mxu0 0
        %703 = vmatpush2.bf16.msra.mxu0 0
        %704 = vmatprep.subr.bf16.mxu0 0
        %705 = vmatpush2.bf16.msra.mxu0 0
        %706 = vmatprep.subr.bf16.mxu0 0
        %707 = vmatpush2.bf16.msra.mxu0 0
        %708 = vmatprep.subr.bf16.mxu0 0
        %709 = vmatpush2.bf16.msra.mxu0 0
        %710 = vmatprep.subr.bf16.mxu0 0
        %711 = vmatpush2.bf16.msra.mxu0 0
        %712 = vmatprep.subr.bf16.mxu0 0
        %713 = vmatpush2.bf16.msra.mxu0 0
        %714 = vmatprep.subr.bf16.mxu0 0
        %715 = vmatpush2.bf16.msra.mxu0 0
        %716 = vmatprep.mubr.bf16.mxu0 0
        %717 = vmatmul.mubr.bf16.gmra.mxu0 %v682
        %v718 = vpop.f32.mrf.mxu0
        %v719 = vadd.f32 %v666, %v718
        %v720 = vpop.f32.mrf.mxu0
        %v721 = vpop.f32.mrf.mxu0
        %v722 = vpop.f32.mrf.mxu0
        %723 = vdwg.mxu0
        %v724 = vld [vmem:[%s590] sm:$0xf]
        %v725 = vld [vmem:[%s590 + $0x4] sm:$0xf]
        %v726 = vld [vmem:[%s590 + $0x8] sm:$0xf]
        %v727 = vld [vmem:[%s590 + $0xc] sm:$0xf]
        %v728 = vld [vmem:[%s603] sm:$0x1]
        %v730 = vlaneseq
        %v731 = vshrl.u32 %v730, 7
        %v732 = vsub.s32 0, %v731
        %v733 = vrot.slane %v728, %v732
        %v739 = vunpack.c.l.b16 %v724
        %v740 = vunpack.c.l.b16 %v725
        %v741 = vunpack.c.l.b16 %v726
        %v742 = vunpack.c.l.b16 %v727
        %v743 = vpack.c.b16 %v740, %v739
        %v744 = vpack.c.b16 %v742, %v741
        %747 = vmatprep.subr.bf16.mxu0 0
        %748 = vmatpush1.bf16.msra.mxu0 0
        %749 = vmatprep.subr.bf16.mxu0 0
        %750 = vmatpush1.bf16.msra.mxu0 0
        %751 = vmatprep.subr.bf16.mxu0 0
        %752 = vmatpush1.bf16.msra.mxu0 0
        %753 = vmatprep.subr.bf16.mxu0 0
        %754 = vmatpush1.bf16.msra.mxu0 0
        %755 = vmatprep.subr.bf16.mxu0 0
        %756 = vmatpush1.bf16.msra.mxu0 0
        %757 = vmatprep.subr.bf16.mxu0 0
        %758 = vmatpush1.bf16.msra.mxu0 0
        %759 = vmatprep.subr.bf16.mxu0 0
        %760 = vmatpush1.bf16.msra.mxu0 %v744
        %761 = vmatprep.subr.bf16.mxu0 0
        %762 = vmatpush1.bf16.msra.mxu0 %v743
        %763 = vmatprep.subr.bf16.mxu0 0
        %764 = vmatpush2.bf16.msra.mxu0 0
        %765 = vmatprep.subr.bf16.mxu0 0
        %766 = vmatpush2.bf16.msra.mxu0 0
        %767 = vmatprep.subr.bf16.mxu0 0
        %768 = vmatpush2.bf16.msra.mxu0 0
        %769 = vmatprep.subr.bf16.mxu0 0
        %770 = vmatpush2.bf16.msra.mxu0 0
        %771 = vmatprep.subr.bf16.mxu0 0
        %772 = vmatpush2.bf16.msra.mxu0 0
        %773 = vmatprep.subr.bf16.mxu0 0
        %774 = vmatpush2.bf16.msra.mxu0 0
        %775 = vmatprep.subr.bf16.mxu0 0
        %776 = vmatpush2.bf16.msra.mxu0 0
        %777 = vmatprep.subr.bf16.mxu0 0
        %778 = vmatpush2.bf16.msra.mxu0 0
        %779 = vmatprep.mubr.bf16.mxu0 0
        %780 = vmatmul.mubr.bf16.gmra.mxu0 %v682
        %v781 = vpop.f32.mrf.mxu0
        %v782 = vadd.f32 %v733, %v781
        %v783 = vpop.f32.mrf.mxu0
        %v784 = vpop.f32.mrf.mxu0
        %v785 = vpop.f32.mrf.mxu0
        %786 = vdwg.mxu0
        %v787 = vld [vmem:[%s595] sm:$0xf]
        %v788 = vld [vmem:[%s595 + $0x4] sm:$0xf]
        %v789 = vld [vmem:[%s595 + $0x8] sm:$0xf]
        %v790 = vld [vmem:[%s595 + $0xc] sm:$0xf]
        %v791 = vld [vmem:[%s607] sm:$0x1]
        %v793 = vlaneseq
        %v794 = vshrl.u32 %v793, 7
        %v795 = vsub.s32 0, %v794
        %v796 = vrot.slane %v791, %v795
        %v802 = vunpack.c.l.b16 %v787
        %v803 = vunpack.c.l.b16 %v788
        %v804 = vunpack.c.l.b16 %v789
        %v805 = vunpack.c.l.b16 %v790
        %v806 = vpack.c.b16 %v803, %v802
        %v807 = vpack.c.b16 %v805, %v804
        %810 = vmatprep.subr.bf16.mxu0 0
        %811 = vmatpush1.bf16.msra.mxu0 0
        %812 = vmatprep.subr.bf16.mxu0 0
        %813 = vmatpush1.bf16.msra.mxu0 0
        %814 = vmatprep.subr.bf16.mxu0 0
        %815 = vmatpush1.bf16.msra.mxu0 0
        %816 = vmatprep.subr.bf16.mxu0 0
        %817 = vmatpush1.bf16.msra.mxu0 0
        %818 = vmatprep.subr.bf16.mxu0 0
        %819 = vmatpush1.bf16.msra.mxu0 0
        %820 = vmatprep.subr.bf16.mxu0 0
        %821 = vmatpush1.bf16.msra.mxu0 0
        %822 = vmatprep.subr.bf16.mxu0 0
        %823 = vmatpush1.bf16.msra.mxu0 %v807
        %824 = vmatprep.subr.bf16.mxu0 0
        %825 = vmatpush1.bf16.msra.mxu0 %v806
        %826 = vmatprep.subr.bf16.mxu0 0
        %827 = vmatpush2.bf16.msra.mxu0 0
        %828 = vmatprep.subr.bf16.mxu0 0
        %829 = vmatpush2.bf16.msra.mxu0 0
        %830 = vmatprep.subr.bf16.mxu0 0
        %831 = vmatpush2.bf16.msra.mxu0 0
        %832 = vmatprep.subr.bf16.mxu0 0
        %833 = vmatpush2.bf16.msra.mxu0 0
        %834 = vmatprep.subr.bf16.mxu0 0
        %835 = vmatpush2.bf16.msra.mxu0 0
        %836 = vmatprep.subr.bf16.mxu0 0
        %837 = vmatpush2.bf16.msra.mxu0 0
        %838 = vmatprep.subr.bf16.mxu0 0
        %839 = vmatpush2.bf16.msra.mxu0 0
        %840 = vmatprep.subr.bf16.mxu0 0
        %841 = vmatpush2.bf16.msra.mxu0 0
        %842 = vmatprep.mubr.bf16.mxu0 0
        %843 = vmatmul.mubr.bf16.gmra.mxu0 %v682
        %v844 = vpop.f32.mrf.mxu0
        %v845 = vadd.f32 %v796, %v844
        %v846 = vpop.f32.mrf.mxu0
        %v847 = vpop.f32.mrf.mxu0
        %v848 = vpop.f32.mrf.mxu0
        %849 = vdwg.mxu0
        %v850 = vmul.f32 %v719, 0.35355338
        %v851 = vpack.c.bf16 %v850, %v850
        %v852 = vpack.c.bf16 %v782, %v782
        %v853 = vpack.c.bf16 %v845, %v845
        %vm854 = vcmask 64512
        %v856 = vsel %vm854, %v851, 0
        %v859 = vsel %vm854, %v852, 0
        %861 = vmatprep.subr.bf16.mxu0 0
        %862 = vmatpush1.bf16.xpose.msra.mxu0 0
        %863 = vmatprep.subr.bf16.mxu0 0
        %864 = vmatpush1.bf16.xpose.msra.mxu0 0
        %865 = vmatprep.subr.bf16.mxu0 0
        %866 = vmatpush1.bf16.xpose.msra.mxu0 0
        %867 = vmatprep.subr.bf16.mxu0 0
        %868 = vmatpush1.bf16.xpose.msra.mxu0 0
        %869 = vmatprep.subr.bf16.mxu0 0
        %870 = vmatpush1.bf16.xpose.msra.mxu0 0
        %871 = vmatprep.subr.bf16.mxu0 0
        %872 = vmatpush1.bf16.xpose.msra.mxu0 0
        %873 = vmatprep.subr.bf16.mxu0 0
        %874 = vmatpush1.bf16.xpose.msra.mxu0 0
        %875 = vmatprep.subr.bf16.mxu0 0
        %876 = vmatpush1.bf16.xpose.msra.mxu0 %v859
        %877 = vmatprep.subr.bf16.mxu0 0
        %878 = vmatpush2.bf16.xpose.msra.mxu0 0
        %879 = vmatprep.subr.bf16.mxu0 0
        %880 = vmatpush2.bf16.xpose.msra.mxu0 0
        %881 = vmatprep.subr.bf16.mxu0 0
        %882 = vmatpush2.bf16.xpose.msra.mxu0 0
        %883 = vmatprep.subr.bf16.mxu0 0
        %884 = vmatpush2.bf16.xpose.msra.mxu0 0
        %885 = vmatprep.subr.bf16.mxu0 0
        %886 = vmatpush2.bf16.xpose.msra.mxu0 0
        %887 = vmatprep.subr.bf16.mxu0 0
        %888 = vmatpush2.bf16.xpose.msra.mxu0 0
        %889 = vmatprep.subr.bf16.mxu0 0
        %890 = vmatpush2.bf16.xpose.msra.mxu0 0
        %891 = vmatprep.subr.bf16.mxu0 0
        %892 = vmatpush2.bf16.xpose.msra.mxu0 0
        %893 = vmatprep.mubr.bf16.mxu0 0
        %894 = vmatmul.mubr.bf16.gmra.mxu0 %v856
        %v895 = vpop.f32.mrf.mxu0
        %v896 = vadd.f32 %v655, %v895
        %v897 = vpop.f32.mrf.mxu0
        %v898 = vpop.f32.mrf.mxu0
        %v899 = vpop.f32.mrf.mxu0
        %900 = vdwg.mxu0
        %v901 = vsel %vm854, %v896, -inf
        %902 = vmax.xlane.f32.xlu0 %v901
        %v903 = vpop.xlane.xlu0 %902
        %v904 = vsub.f32 %v896, %v903
        %v905 = vmul.f32 %v904, 1.442695
        %v906 = vpow.pop %v905
        %v907 = vsel %vm854, %v906, 0.0
        %908 = vadd.xlane.f32.xlu0 %v907
        %v909 = vpop.xlane.xlu0 %908
        %v910 = vrcp.pop %v909
        %v911 = vmul.f32 %v906, %v910
        %v912 = vpack.c.bf16 %v911, %v911
        %v914 = vsel %vm854, %v912, 0
        %vm916 = vcmask 1043456
        %v918 = vsel %vm916, %v853, 0
        %920 = vmatprep.subr.bf16.mxu0 0
        %921 = vmatpush1.bf16.msra.mxu0 0
        %922 = vmatprep.subr.bf16.mxu0 0
        %923 = vmatpush1.bf16.msra.mxu0 0
        %924 = vmatprep.subr.bf16.mxu0 0
        %925 = vmatpush1.bf16.msra.mxu0 0
        %926 = vmatprep.subr.bf16.mxu0 0
        %927 = vmatpush1.bf16.msra.mxu0 0
        %928 = vmatprep.subr.bf16.mxu0 0
        %929 = vmatpush1.bf16.msra.mxu0 0
        %930 = vmatprep.subr.bf16.mxu0 0
        %931 = vmatpush1.bf16.msra.mxu0 0
        %932 = vmatprep.subr.bf16.mxu0 0
        %933 = vmatpush1.bf16.msra.mxu0 0
        %934 = vmatprep.subr.bf16.mxu0 0
        %935 = vmatpush1.bf16.msra.mxu0 %v918
        %936 = vmatprep.subr.bf16.mxu0 0
        %937 = vmatpush2.bf16.msra.mxu0 0
        %938 = vmatprep.subr.bf16.mxu0 0
        %939 = vmatpush2.bf16.msra.mxu0 0
        %940 = vmatprep.subr.bf16.mxu0 0
        %941 = vmatpush2.bf16.msra.mxu0 0
        %942 = vmatprep.subr.bf16.mxu0 0
        %943 = vmatpush2.bf16.msra.mxu0 0
        %944 = vmatprep.subr.bf16.mxu0 0
        %945 = vmatpush2.bf16.msra.mxu0 0
        %946 = vmatprep.subr.bf16.mxu0 0
        %947 = vmatpush2.bf16.msra.mxu0 0
        %948 = vmatprep.subr.bf16.mxu0 0
        %949 = vmatpush2.bf16.msra.mxu0 0
        %950 = vmatprep.subr.bf16.mxu0 0
        %951 = vmatpush2.bf16.msra.mxu0 0
        %952 = vmatprep.mubr.bf16.mxu0 0
        %953 = vmatmul.mubr.bf16.gmra.mxu0 %v914
        %v954 = vpop.f32.mrf.mxu0
        %v955 = vadd.f32 0.0, %v954
        %v956 = vpop.f32.mrf.mxu0
        %v957 = vpop.f32.mrf.mxu0
        %v958 = vpop.f32.mrf.mxu0
        %959 = vdwg.mxu0
        %v960 = vpack.c.bf16 %v955, %v955
        %v961 = vld [vmem:[%s612] sm:$0xf]
        %s962 = scalar_lea.vmem %s585, 16
        %v963 = vld [vmem:[%s962] sm:$0xf]
        %v964 = vld [vmem:[%s962 + $0x4] sm:$0xf]
        %v965 = vld [vmem:[%s962 + $0x8] sm:$0xf]
        %v966 = vld [vmem:[%s962 + $0xc] sm:$0xf]
        %s967 = scalar_lea.vmem %s599, 1
        %v968 = vld [vmem:[%s967] sm:$0x1]
        %v970 = vlaneseq
        %v971 = vshrl.u32 %v970, 7
        %v972 = vsub.s32 0, %v971
        %v973 = vrot.slane %v968, %v972
        %v979 = vunpack.c.l.b16 %v963
        %v980 = vunpack.c.l.b16 %v964
        %v981 = vunpack.c.l.b16 %v965
        %v982 = vunpack.c.l.b16 %v966
        %v983 = vpack.c.b16 %v980, %v979
        %v984 = vpack.c.b16 %v982, %v981
        %987 = vmatprep.subr.bf16.mxu0 0
        %988 = vmatpush1.bf16.msra.mxu0 0
        %989 = vmatprep.subr.bf16.mxu0 0
        %990 = vmatpush1.bf16.msra.mxu0 0
        %991 = vmatprep.subr.bf16.mxu0 0
        %992 = vmatpush1.bf16.msra.mxu0 0
        %993 = vmatprep.subr.bf16.mxu0 0
        %994 = vmatpush1.bf16.msra.mxu0 0
        %995 = vmatprep.subr.bf16.mxu0 0
        %996 = vmatpush1.bf16.msra.mxu0 0
        %997 = vmatprep.subr.bf16.mxu0 0
        %998 = vmatpush1.bf16.msra.mxu0 0
        %999 = vmatprep.subr.bf16.mxu0 0
        %1000 = vmatpush1.bf16.msra.mxu0 %v984
        %1001 = vmatprep.subr.bf16.mxu0 0
        %1002 = vmatpush1.bf16.msra.mxu0 %v983
        %1003 = vmatprep.subr.bf16.mxu0 0
        %1004 = vmatpush2.bf16.msra.mxu0 0
        %1005 = vmatprep.subr.bf16.mxu0 0
        %1006 = vmatpush2.bf16.msra.mxu0 0
        %1007 = vmatprep.subr.bf16.mxu0 0
        %1008 = vmatpush2.bf16.msra.mxu0 0
        %1009 = vmatprep.subr.bf16.mxu0 0
        %1010 = vmatpush2.bf16.msra.mxu0 0
        %1011 = vmatprep.subr.bf16.mxu0 0
        %1012 = vmatpush2.bf16.msra.mxu0 0
        %1013 = vmatprep.subr.bf16.mxu0 0
        %1014 = vmatpush2.bf16.msra.mxu0 0
        %1015 = vmatprep.subr.bf16.mxu0 0
        %1016 = vmatpush2.bf16.msra.mxu0 0
        %1017 = vmatprep.subr.bf16.mxu0 0
        %1018 = vmatpush2.bf16.msra.mxu0 0
        %1019 = vmatprep.mubr.bf16.mxu0 0
        %1020 = vmatmul.mubr.bf16.gmra.mxu0 %v682
        %v1021 = vpop.f32.mrf.mxu0
        %v1022 = vadd.f32 %v973, %v1021
        %v1023 = vpop.f32.mrf.mxu0
        %v1024 = vpop.f32.mrf.mxu0
        %v1025 = vpop.f32.mrf.mxu0
        %1026 = vdwg.mxu0
        %s1027 = scalar_lea.vmem %s590, 16
        %v1028 = vld [vmem:[%s1027] sm:$0xf]
        %v1029 = vld [vmem:[%s1027 + $0x4] sm:$0xf]
        %v1030 = vld [vmem:[%s1027 + $0x8] sm:$0xf]
        %v1031 = vld [vmem:[%s1027 + $0xc] sm:$0xf]
        %s1032 = scalar_lea.vmem %s603, 1
        %v1033 = vld [vmem:[%s1032] sm:$0x1]
        %v1035 = vlaneseq
        %v1036 = vshrl.u32 %v1035, 7
        %v1037 = vsub.s32 0, %v1036
        %v1038 = vrot.slane %v1033, %v1037
        %v1044 = vunpack.c.l.b16 %v1028
        %v1045 = vunpack.c.l.b16 %v1029
        %v1046 = vunpack.c.l.b16 %v1030
        %v1047 = vunpack.c.l.b16 %v1031
        %v1048 = vpack.c.b16 %v1045, %v1044
        %v1049 = vpack.c.b16 %v1047, %v1046
        %1052 = vmatprep.subr.bf16.mxu0 0
        %1053 = vmatpush1.bf16.msra.mxu0 0
        %1054 = vmatprep.subr.bf16.mxu0 0
        %1055 = vmatpush1.bf16.msra.mxu0 0
        %1056 = vmatprep.subr.bf16.mxu0 0
        %1057 = vmatpush1.bf16.msra.mxu0 0
        %1058 = vmatprep.subr.bf16.mxu0 0
        %1059 = vmatpush1.bf16.msra.mxu0 0
        %1060 = vmatprep.subr.bf16.mxu0 0
        %1061 = vmatpush1.bf16.msra.mxu0 0
        %1062 = vmatprep.subr.bf16.mxu0 0
        %1063 = vmatpush1.bf16.msra.mxu0 0
        %1064 = vmatprep.subr.bf16.mxu0 0
        %1065 = vmatpush1.bf16.msra.mxu0 %v1049
        %1066 = vmatprep.subr.bf16.mxu0 0
        %1067 = vmatpush1.bf16.msra.mxu0 %v1048
        %1068 = vmatprep.subr.bf16.mxu0 0
        %1069 = vmatpush2.bf16.msra.mxu0 0
        %1070 = vmatprep.subr.bf16.mxu0 0
        %1071 = vmatpush2.bf16.msra.mxu0 0
        %1072 = vmatprep.subr.bf16.mxu0 0
        %1073 = vmatpush2.bf16.msra.mxu0 0
        %1074 = vmatprep.subr.bf16.mxu0 0
        %1075 = vmatpush2.bf16.msra.mxu0 0
        %1076 = vmatprep.subr.bf16.mxu0 0
        %1077 = vmatpush2.bf16.msra.mxu0 0
        %1078 = vmatprep.subr.bf16.mxu0 0
        %1079 = vmatpush2.bf16.msra.mxu0 0
        %1080 = vmatprep.subr.bf16.mxu0 0
        %1081 = vmatpush2.bf16.msra.mxu0 0
        %1082 = vmatprep.subr.bf16.mxu0 0
        %1083 = vmatpush2.bf16.msra.mxu0 0
        %1084 = vmatprep.mubr.bf16.mxu0 0
        %1085 = vmatmul.mubr.bf16.gmra.mxu0 %v682
        %v1086 = vpop.f32.mrf.mxu0
        %v1087 = vadd.f32 %v1038, %v1086
        %v1088 = vpop.f32.mrf.mxu0
        %v1089 = vpop.f32.mrf.mxu0
        %v1090 = vpop.f32.mrf.mxu0
        %1091 = vdwg.mxu0
        %s1092 = scalar_lea.vmem %s595, 16
        %v1093 = vld [vmem:[%s1092] sm:$0xf]
        %v1094 = vld [vmem:[%s1092 + $0x4] sm:$0xf]
        %v1095 = vld [vmem:[%s1092 + $0x8] sm:$0xf]
        %v1096 = vld [vmem:[%s1092 + $0xc] sm:$0xf]
        %s1097 = scalar_lea.vmem %s607, 1
        %v1098 = vld [vmem:[%s1097] sm:$0x1]
        %v1100 = vlaneseq
        %v1101 = vshrl.u32 %v1100, 7
        %v1102 = vsub.s32 0, %v1101
        %v1103 = vrot.slane %v1098, %v1102
        %v1109 = vunpack.c.l.b16 %v1093
        %v1110 = vunpack.c.l.b16 %v1094
        %v1111 = vunpack.c.l.b16 %v1095
        %v1112 = vunpack.c.l.b16 %v1096
        %v1113 = vpack.c.b16 %v1110, %v1109
        %v1114 = vpack.c.b16 %v1112, %v1111
        %1117 = vmatprep.subr.bf16.mxu0 0
        %1118 = vmatpush1.bf16.msra.mxu0 0
        %1119 = vmatprep.subr.bf16.mxu0 0
        %1120 = vmatpush1.bf16.msra.mxu0 0
        %1121 = vmatprep.subr.bf16.mxu0 0
        %1122 = vmatpush1.bf16.msra.mxu0 0
        %1123 = vmatprep.subr.bf16.mxu0 0
        %1124 = vmatpush1.bf16.msra.mxu0 0
        %1125 = vmatprep.subr.bf16.mxu0 0
        %1126 = vmatpush1.bf16.msra.mxu0 0
        %1127 = vmatprep.subr.bf16.mxu0 0
        %1128 = vmatpush1.bf16.msra.mxu0 0
        %1129 = vmatprep.subr.bf16.mxu0 0
        %1130 = vmatpush1.bf16.msra.mxu0 %v1114
        %1131 = vmatprep.subr.bf16.mxu0 0
        %1132 = vmatpush1.bf16.msra.mxu0 %v1113
        %1133 = vmatprep.subr.bf16.mxu0 0
        %1134 = vmatpush2.bf16.msra.mxu0 0
        %1135 = vmatprep.subr.bf16.mxu0 0
        %1136 = vmatpush2.bf16.msra.mxu0 0
        %1137 = vmatprep.subr.bf16.mxu0 0
        %1138 = vmatpush2.bf16.msra.mxu0 0
        %1139 = vmatprep.subr.bf16.mxu0 0
        %1140 = vmatpush2.bf16.msra.mxu0 0
        %1141 = vmatprep.subr.bf16.mxu0 0
        %1142 = vmatpush2.bf16.msra.mxu0 0
        %1143 = vmatprep.subr.bf16.mxu0 0
        %1144 = vmatpush2.bf16.msra.mxu0 0
        %1145 = vmatprep.subr.bf16.mxu0 0
        %1146 = vmatpush2.bf16.msra.mxu0 0
        %1147 = vmatprep.subr.bf16.mxu0 0
        %1148 = vmatpush2.bf16.msra.mxu0 0
        %1149 = vmatprep.mubr.bf16.mxu0 0
        %1150 = vmatmul.mubr.bf16.gmra.mxu0 %v682
        %v1151 = vpop.f32.mrf.mxu0
        %v1152 = vadd.f32 %v1103, %v1151
        %v1153 = vpop.f32.mrf.mxu0
        %v1154 = vpop.f32.mrf.mxu0
        %v1155 = vpop.f32.mrf.mxu0
        %1156 = vdwg.mxu0
        %v1157 = vmul.f32 %v1022, 0.35355338
        %v1158 = vpack.c.bf16 %v1157, %v1157
        %v1159 = vpack.c.bf16 %v1087, %v1087
        %v1160 = vpack.c.bf16 %v1152, %v1152
        %v1162 = vsel %vm854, %v1158, 0
        %v1165 = vsel %vm854, %v1159, 0
        %1167 = vmatprep.subr.bf16.mxu0 0
        %1168 = vmatpush1.bf16.xpose.msra.mxu0 0
        %1169 = vmatprep.subr.bf16.mxu0 0
        %1170 = vmatpush1.bf16.xpose.msra.mxu0 0
        %1171 = vmatprep.subr.bf16.mxu0 0
        %1172 = vmatpush1.bf16.xpose.msra.mxu0 0
        %1173 = vmatprep.subr.bf16.mxu0 0
        %1174 = vmatpush1.bf16.xpose.msra.mxu0 0
        %1175 = vmatprep.subr.bf16.mxu0 0
        %1176 = vmatpush1.bf16.xpose.msra.mxu0 0
        %1177 = vmatprep.subr.bf16.mxu0 0
        %1178 = vmatpush1.bf16.xpose.msra.mxu0 0
        %1179 = vmatprep.subr.bf16.mxu0 0
        %1180 = vmatpush1.bf16.xpose.msra.mxu0 0
        %1181 = vmatprep.subr.bf16.mxu0 0
        %1182 = vmatpush1.bf16.xpose.msra.mxu0 %v1165
        %1183 = vmatprep.subr.bf16.mxu0 0
        %1184 = vmatpush2.bf16.xpose.msra.mxu0 0
        %1185 = vmatprep.subr.bf16.mxu0 0
        %1186 = vmatpush2.bf16.xpose.msra.mxu0 0
        %1187 = vmatprep.subr.bf16.mxu0 0
        %1188 = vmatpush2.bf16.xpose.msra.mxu0 0
        %1189 = vmatprep.subr.bf16.mxu0 0
        %1190 = vmatpush2.bf16.xpose.msra.mxu0 0
        %1191 = vmatprep.subr.bf16.mxu0 0
        %1192 = vmatpush2.bf16.xpose.msra.mxu0 0
        %1193 = vmatprep.subr.bf16.mxu0 0
        %1194 = vmatpush2.bf16.xpose.msra.mxu0 0
        %1195 = vmatprep.subr.bf16.mxu0 0
        %1196 = vmatpush2.bf16.xpose.msra.mxu0 0
        %1197 = vmatprep.subr.bf16.mxu0 0
        %1198 = vmatpush2.bf16.xpose.msra.mxu0 0
        %1199 = vmatprep.mubr.bf16.mxu0 0
        %1200 = vmatmul.mubr.bf16.gmra.mxu0 %v1162
        %v1201 = vpop.f32.mrf.mxu0
        %v1202 = vadd.f32 %v655, %v1201
        %v1203 = vpop.f32.mrf.mxu0
        %v1204 = vpop.f32.mrf.mxu0
        %v1205 = vpop.f32.mrf.mxu0
        %1206 = vdwg.mxu0
        %v1207 = vsel %vm854, %v1202, -inf
        %1208 = vmax.xlane.f32.xlu0 %v1207
        %v1209 = vpop.xlane.xlu0 %1208
        %v1210 = vsub.f32 %v1202, %v1209
        %v1211 = vmul.f32 %v1210, 1.442695
        %v1212 = vpow.pop %v1211
        %v1213 = vsel %vm854, %v1212, 0.0
        %1214 = vadd.xlane.f32.xlu0 %v1213
        %v1215 = vpop.xlane.xlu0 %1214
        %v1216 = vrcp.pop %v1215
        %v1217 = vmul.f32 %v1212, %v1216
        %v1218 = vpack.c.bf16 %v1217, %v1217
        %v1220 = vsel %vm854, %v1218, 0
        %v1223 = vsel %vm916, %v1160, 0
        %1225 = vmatprep.subr.bf16.mxu0 0
        %1226 = vmatpush1.bf16.msra.mxu0 0
        %1227 = vmatprep.subr.bf16.mxu0 0
        %1228 = vmatpush1.bf16.msra.mxu0 0
        %1229 = vmatprep.subr.bf16.mxu0 0
        %1230 = vmatpush1.bf16.msra.mxu0 0
        %1231 = vmatprep.subr.bf16.mxu0 0
        %1232 = vmatpush1.bf16.msra.mxu0 0
        %1233 = vmatprep.subr.bf16.mxu0 0
        %1234 = vmatpush1.bf16.msra.mxu0 0
        %1235 = vmatprep.subr.bf16.mxu0 0
        %1236 = vmatpush1.bf16.msra.mxu0 0
        %1237 = vmatprep.subr.bf16.mxu0 0
        %1238 = vmatpush1.bf16.msra.mxu0 0
        %1239 = vmatprep.subr.bf16.mxu0 0
        %1240 = vmatpush1.bf16.msra.mxu0 %v1223
        %1241 = vmatprep.subr.bf16.mxu0 0
        %1242 = vmatpush2.bf16.msra.mxu0 0
        %1243 = vmatprep.subr.bf16.mxu0 0
        %1244 = vmatpush2.bf16.msra.mxu0 0
        %1245 = vmatprep.subr.bf16.mxu0 0
        %1246 = vmatpush2.bf16.msra.mxu0 0
        %1247 = vmatprep.subr.bf16.mxu0 0
        %1248 = vmatpush2.bf16.msra.mxu0 0
        %1249 = vmatprep.subr.bf16.mxu0 0
        %1250 = vmatpush2.bf16.msra.mxu0 0
        %1251 = vmatprep.subr.bf16.mxu0 0
        %1252 = vmatpush2.bf16.msra.mxu0 0
        %1253 = vmatprep.subr.bf16.mxu0 0
        %1254 = vmatpush2.bf16.msra.mxu0 0
        %1255 = vmatprep.subr.bf16.mxu0 0
        %1256 = vmatpush2.bf16.msra.mxu0 0
        %1257 = vmatprep.mubr.bf16.mxu0 0
        %1258 = vmatmul.mubr.bf16.gmra.mxu0 %v1220
        %v1259 = vpop.f32.mrf.mxu0
        %v1260 = vadd.f32 0.0, %v1259
        %v1261 = vpop.f32.mrf.mxu0
        %v1262 = vpop.f32.mrf.mxu0
        %v1263 = vpop.f32.mrf.mxu0
        %1264 = vdwg.mxu0
        %v1265 = vpack.c.bf16 %v1260, %v1260
        %s1266 = scalar_lea.vmem %s612, 4
        %v1267 = vld [vmem:[%s1266] sm:$0xf]
        %v1269 = vsel %vm854, %v1265, 0
        %v1272 = vsel %vm916, %v1267, 0
        %1274 = vmatprep.subr.bf16.mxu0 0
        %1275 = vmatpush1.bf16.msra.mxu0 0
        %1276 = vmatprep.subr.bf16.mxu0 0
        %1277 = vmatpush1.bf16.msra.mxu0 0
        %1278 = vmatprep.subr.bf16.mxu0 0
        %1279 = vmatpush1.bf16.msra.mxu0 0
        %1280 = vmatprep.subr.bf16.mxu0 0
        %1281 = vmatpush1.bf16.msra.mxu0 0
        %1282 = vmatprep.subr.bf16.mxu0 0
        %1283 = vmatpush1.bf16.msra.mxu0 0
        %1284 = vmatprep.subr.bf16.mxu0 0
        %1285 = vmatpush1.bf16.msra.mxu0 0
        %1286 = vmatprep.subr.bf16.mxu0 0
        %1287 = vmatpush1.bf16.msra.mxu0 0
        %1288 = vmatprep.subr.bf16.mxu0 0
        %1289 = vmatpush1.bf16.msra.mxu0 %v1272
        %1290 = vmatprep.subr.bf16.mxu0 0
        %1291 = vmatpush2.bf16.msra.mxu0 0
        %1292 = vmatprep.subr.bf16.mxu0 0
        %1293 = vmatpush2.bf16.msra.mxu0 0
        %1294 = vmatprep.subr.bf16.mxu0 0
        %1295 = vmatpush2.bf16.msra.mxu0 0
        %1296 = vmatprep.subr.bf16.mxu0 0
        %1297 = vmatpush2.bf16.msra.mxu0 0
        %1298 = vmatprep.subr.bf16.mxu0 0
        %1299 = vmatpush2.bf16.msra.mxu0 0
        %1300 = vmatprep.subr.bf16.mxu0 0
        %1301 = vmatpush2.bf16.msra.mxu0 0
        %1302 = vmatprep.subr.bf16.mxu0 0
        %1303 = vmatpush2.bf16.msra.mxu0 0
        %1304 = vmatprep.subr.bf16.mxu0 0
        %1305 = vmatpush2.bf16.msra.mxu0 0
        %1306 = vmatprep.mubr.bf16.mxu0 0
        %1307 = vmatmul.mubr.bf16.gmra.mxu0 %v1269
        %v1308 = vpop.f32.mrf.mxu0
        %v1309 = vadd.f32 0.0, %v1308
        %v1310 = vpop.f32.mrf.mxu0
        %v1311 = vpop.f32.mrf.mxu0
        %v1312 = vpop.f32.mrf.mxu0
        %1313 = vdwg.mxu0
        %v1315 = vsel %vm854, %v960, 0
        %v1318 = vsel %vm916, %v961, 0
        %1320 = vmatprep.subr.bf16.mxu0 0
        %1321 = vmatpush1.bf16.msra.mxu0 0
        %1322 = vmatprep.subr.bf16.mxu0 0
        %1323 = vmatpush1.bf16.msra.mxu0 0
        %1324 = vmatprep.subr.bf16.mxu0 0
        %1325 = vmatpush1.bf16.msra.mxu0 0
        %1326 = vmatprep.subr.bf16.mxu0 0
        %1327 = vmatpush1.bf16.msra.mxu0 0
        %1328 = vmatprep.subr.bf16.mxu0 0
        %1329 = vmatpush1.bf16.msra.mxu0 0
        %1330 = vmatprep.subr.bf16.mxu0 0
        %1331 = vmatpush1.bf16.msra.mxu0 0
        %1332 = vmatprep.subr.bf16.mxu0 0
        %1333 = vmatpush1.bf16.msra.mxu0 0
        %1334 = vmatprep.subr.bf16.mxu0 0
        %1335 = vmatpush1.bf16.msra.mxu0 %v1318
        %1336 = vmatprep.subr.bf16.mxu0 0
        %1337 = vmatpush2.bf16.msra.mxu0 0
        %1338 = vmatprep.subr.bf16.mxu0 0
        %1339 = vmatpush2.bf16.msra.mxu0 0
        %1340 = vmatprep.subr.bf16.mxu0 0
        %1341 = vmatpush2.bf16.msra.mxu0 0
        %1342 = vmatprep.subr.bf16.mxu0 0
        %1343 = vmatpush2.bf16.msra.mxu0 0
        %1344 = vmatprep.subr.bf16.mxu0 0
        %1345 = vmatpush2.bf16.msra.mxu0 0
        %1346 = vmatprep.subr.bf16.mxu0 0
        %1347 = vmatpush2.bf16.msra.mxu0 0
        %1348 = vmatprep.subr.bf16.mxu0 0
        %1349 = vmatpush2.bf16.msra.mxu0 0
        %1350 = vmatprep.subr.bf16.mxu0 0
        %1351 = vmatpush2.bf16.msra.mxu0 0
        %1352 = vmatprep.mubr.bf16.mxu0 0
        %1353 = vmatmul.mubr.bf16.gmra.mxu0 %v1315
        %v1354 = vpop.f32.mrf.mxu0
        %v1355 = vadd.f32 %v1309, %v1354
        %v1356 = vpop.f32.mrf.mxu0
        %v1357 = vpop.f32.mrf.mxu0
        %v1358 = vpop.f32.mrf.mxu0
        %1359 = vdwg.mxu0
        %v1360 = vld [vmem:[%s629] sm:$0x3f]
        %v1361 = vlaneseq
        %v1362 = vshrl.u32 %v1361, 7
        %v1363 = vsub.s32 0, %v1362
        %v1364 = vrot.slane %v1360, %v1363
        %v1365 = vadd.f32 %v1355, %v1364
        %v1366 = vadd.f32 %v1365, %v653
        %v1367 = vsel %vm680, %v1366, 0.0
        %1368 = vadd.xlane.f32.xlu0 %v1367
        %v1369 = vpop.xlane.xlu0 %1368
        %v1370 = vrcp.pop 32.0
        %v1371 = vmul.f32 %v1369, %v1370
        %v1372 = vsub.f32 %v1366, %v1371
        %v1373 = vmul.f32 %v1372, %v1372
        %v1374 = vsel %vm680, %v1373, 0.0
        %1375 = vadd.xlane.f32.xlu0 %v1374
        %v1376 = vpop.xlane.xlu0 %1375
        %v1377 = vmul.f32 %v1376, %v1370
        %v1378 = vadd.f32 %v1377, 1e-05
        %v1379 = vrsqrt.pop %v1378
        %v1380 = vmul.f32 %v1372, %v1379
        %v1381 = vlaneseq
        %v1382 = vshrl.u32 %v1381, 7
        %v1383 = vsub.s32 1, %v1382
        %v1384 = vrot.slane %v1360, %v1383
        %v1385 = vmul.f32 %v1380, %v1384
        %v1386 = vlaneseq
        %v1387 = vshrl.u32 %v1386, 7
        %v1388 = vsub.s32 2, %v1387
        %v1389 = vrot.slane %v1360, %v1388
        %v1390 = vadd.f32 %v1385, %v1389
        %1392 = vset.pattern.permute.xlu0 0
        %1393 = vperm.xlu0 %1392, %v656
        %v1394 = vpop.permute.xlu0 %1393
        %v1396 = vmul.f32 %v1390, %v1394
        %v1397 = vpack.c.bf16 %v1396, %v1396
        %v1398 = vld [vmem:[%s617] sm:$0xf]
        %v1399 = vld [vmem:[%s617 + $0x4] sm:$0xf]
        %v1400 = vld [vmem:[%s617 + $0x8] sm:$0xf]
        %v1401 = vld [vmem:[%s617 + $0xc] sm:$0xf]
        %v1402 = vld [vmem:[%s620] sm:$0x1]
        %v1404 = vlaneseq
        %v1405 = vshrl.u32 %v1404, 7
        %v1406 = vsub.s32 0, %v1405
        %v1407 = vrot.slane %v1402, %v1406
        %v1413 = vunpack.c.l.b16 %v1398
        %v1414 = vunpack.c.l.b16 %v1399
        %v1415 = vunpack.c.l.b16 %v1400
        %v1416 = vunpack.c.l.b16 %v1401
        %v1417 = vpack.c.b16 %v1414, %v1413
        %v1418 = vpack.c.b16 %v1416, %v1415
        %v1422 = vsel %vm680, %v1397, 0
        %1424 = vmatprep.subr.bf16.mxu0 0
        %1425 = vmatpush1.bf16.msra.mxu0 0
        %1426 = vmatprep.subr.bf16.mxu0 0
        %1427 = vmatpush1.bf16.msra.mxu0 0
        %1428 = vmatprep.subr.bf16.mxu0 0
        %1429 = vmatpush1.bf16.msra.mxu0 0
        %1430 = vmatprep.subr.bf16.mxu0 0
        %1431 = vmatpush1.bf16.msra.mxu0 0
        %1432 = vmatprep.subr.bf16.mxu0 0
        %1433 = vmatpush1.bf16.msra.mxu0 0
        %1434 = vmatprep.subr.bf16.mxu0 0
        %1435 = vmatpush1.bf16.msra.mxu0 0
        %1436 = vmatprep.subr.bf16.mxu0 0
        %1437 = vmatpush1.bf16.msra.mxu0 %v1418
        %1438 = vmatprep.subr.bf16.mxu0 0
        %1439 = vmatpush1.bf16.msra.mxu0 %v1417
        %1440 = vmatprep.subr.bf16.mxu0 0
        %1441 = vmatpush2.bf16.msra.mxu0 0
        %1442 = vmatprep.subr.bf16.mxu0 0
        %1443 = vmatpush2.bf16.msra.mxu0 0
        %1444 = vmatprep.subr.bf16.mxu0 0
        %1445 = vmatpush2.bf16.msra.mxu0 0
        %1446 = vmatprep.subr.bf16.mxu0 0
        %1447 = vmatpush2.bf16.msra.mxu0 0
        %1448 = vmatprep.subr.bf16.mxu0 0
        %1449 = vmatpush2.bf16.msra.mxu0 0
        %1450 = vmatprep.subr.bf16.mxu0 0
        %1451 = vmatpush2.bf16.msra.mxu0 0
        %1452 = vmatprep.subr.bf16.mxu0 0
        %1453 = vmatpush2.bf16.msra.mxu0 0
        %1454 = vmatprep.subr.bf16.mxu0 0
        %1455 = vmatpush2.bf16.msra.mxu0 0
        %1456 = vmatprep.mubr.bf16.mxu0 0
        %1457 = vmatmul.mubr.bf16.gmra.mxu0 %v1422
        %v1458 = vpop.f32.mrf.mxu0
        %v1459 = vadd.f32 %v1407, %v1458
        %v1460 = vpop.f32.mrf.mxu0
        %v1461 = vpop.f32.mrf.mxu0
        %v1462 = vpop.f32.mrf.mxu0
        %1463 = vdwg.mxu0
        %v1464 = vmax.f32 %v1459, 0.0
        %v1465 = vpack.c.bf16 %v1464, %v1464
        %v1466 = vld [vmem:[%s625] sm:$0xf]
        %v1467 = vld [vmem:[%s625 + $0x4] sm:$0xf]
        %v1468 = vld [vmem:[%s625 + $0x8] sm:$0xf]
        %v1469 = vld [vmem:[%s625 + $0xc] sm:$0xf]
        %v1470 = vld [vmem:[%s625 + $0x10] sm:$0xf]
        %v1471 = vld [vmem:[%s625 + $0x14] sm:$0xf]
        %v1472 = vld [vmem:[%s625 + $0x18] sm:$0xf]
        %v1473 = vld [vmem:[%s625 + $0x1c] sm:$0xf]
        %v1474 = vlaneseq
        %v1475 = vshrl.u32 %v1474, 7
        %v1476 = vsub.s32 3, %v1475
        %v1477 = vrot.slane %v1360, %v1476
        %v1486 = vunpack.c.l.b16 %v1466
        %v1487 = vunpack.c.l.b16 %v1467
        %v1488 = vunpack.c.l.b16 %v1468
        %v1489 = vunpack.c.l.b16 %v1469
        %v1490 = vunpack.c.l.b16 %v1470
        %v1491 = vunpack.c.l.b16 %v1471
        %v1492 = vunpack.c.l.b16 %v1472
        %v1493 = vunpack.c.l.b16 %v1473
        %v1494 = vpack.c.b16 %v1487, %v1486
        %v1495 = vpack.c.b16 %v1489, %v1488
        %v1496 = vpack.c.b16 %v1491, %v1490
        %v1497 = vpack.c.b16 %v1493, %v1492
        %vm1502 = vcmask 523264
        %v1504 = vsel %vm1502, %v1465, 0
        %1506 = vmatprep.subr.bf16.mxu0 0
        %1507 = vmatpush1.bf16.msra.mxu0 0
        %1508 = vmatprep.subr.bf16.mxu0 0
        %1509 = vmatpush1.bf16.msra.mxu0 0
        %1510 = vmatprep.subr.bf16.mxu0 0
        %1511 = vmatpush1.bf16.msra.mxu0 0
        %1512 = vmatprep.subr.bf16.mxu0 0
        %1513 = vmatpush1.bf16.msra.mxu0 0
        %1514 = vmatprep.subr.bf16.mxu0 0
        %1515 = vmatpush1.bf16.msra.mxu0 %v1497
        %1516 = vmatprep.subr.bf16.mxu0 0
        %1517 = vmatpush1.bf16.msra.mxu0 %v1496
        %1518 = vmatprep.subr.bf16.mxu0 0
        %1519 = vmatpush1.bf16.msra.mxu0 %v1495
        %1520 = vmatprep.subr.bf16.mxu0 0
        %1521 = vmatpush1.bf16.msra.mxu0 %v1494
        %1522 = vmatprep.subr.bf16.mxu0 0
        %1523 = vmatpush2.bf16.msra.mxu0 0
        %1524 = vmatprep.subr.bf16.mxu0 0
        %1525 = vmatpush2.bf16.msra.mxu0 0
        %1526 = vmatprep.subr.bf16.mxu0 0
        %1527 = vmatpush2.bf16.msra.mxu0 0
        %1528 = vmatprep.subr.bf16.mxu0 0
        %1529 = vmatpush2.bf16.msra.mxu0 0
        %1530 = vmatprep.subr.bf16.mxu0 0
        %1531 = vmatpush2.bf16.msra.mxu0 0
        %1532 = vmatprep.subr.bf16.mxu0 0
        %1533 = vmatpush2.bf16.msra.mxu0 0
        %1534 = vmatprep.subr.bf16.mxu0 0
        %1535 = vmatpush2.bf16.msra.mxu0 0
        %1536 = vmatprep.subr.bf16.mxu0 0
        %1537 = vmatpush2.bf16.msra.mxu0 0
        %1538 = vmatprep.mubr.bf16.mxu0 0
        %1539 = vmatmul.mubr.bf16.gmra.mxu0 %v1504
        %v1540 = vpop.f32.mrf.mxu0
        %v1541 = vadd.f32 %v1477, %v1540
        %v1542 = vpop.f32.mrf.mxu0
        %v1543 = vpop.f32.mrf.mxu0
        %v1544 = vpop.f32.mrf.mxu0
        %1545 = vdwg.mxu0
        %v1546 = vadd.f32 %v1541, %v1396
        %v1547 = vsel %vm680, %v1546, 0.0
        %1548 = vadd.xlane.f32.xlu0 %v1547
        %v1549 = vpop.xlane.xlu0 %1548
        %v1550 = vmul.f32 %v1549, %v1370
        %v1551 = vsub.f32 %v1546, %v1550
        %v1552 = vmul.f32 %v1551, %v1551
        %v1553 = vsel %vm680, %v1552, 0.0
        %1554 = vadd.xlane.f32.xlu0 %v1553
        %v1555 = vpop.xlane.xlu0 %1554
        %v1556 = vmul.f32 %v1555, %v1370
        %v1557 = vadd.f32 %v1556, 1e-05
        %v1558 = vrsqrt.pop %v1557
        %v1559 = vmul.f32 %v1551, %v1558
        %v1560 = vlaneseq
        %v1561 = vshrl.u32 %v1560, 7
        %v1562 = vsub.s32 4, %v1561
        %v1563 = vrot.slane %v1360, %v1562
        %v1564 = vmul.f32 %v1559, %v1563
        %v1565 = vlaneseq
        %v1566 = vshrl.u32 %v1565, 7
        %v1567 = vsub.s32 5, %v1566
        %v1568 = vrot.slane %v1360, %v1567
        %v1569 = vadd.f32 %v1564, %v1568
        %v1570 = vmul.f32 %v1569, %v1394
        %1571 = vst.msk [vmem:[#allocation4] sm:$0xff] %vm680, %v1570
        %p1572 = scmp.eq.s32.totalorder %s38, 1
        // Predicated region
        $region73: #{tpu_custom_call.1} parent=67 // pred_check
          %p1573 = pneg %p1572
        $region74: #{tpu_custom_call.1} parent=67 // pred_check_branch
          %1575 = sbr.rel (%p1573) target = $region76
        $region75: #{tpu_custom_call.1} parent=67 // pred_region
          %1576 = vst.msk [vmem:[%s576] sm:$0xff] %vm680, %v1570
        $region76: #{tpu_custom_call.1} parent=67 // pred_fallthru
          _
        %s1577 = sand.u32 %s365, 1
        %s1578 = scalar_lea.sflag [#allocation8], %s1577
        %s1579 = sand.u32 %s365, 1
        %s1580 = smul.addr %s1579, 8
        %s1581 = scalar_lea.vmem [#allocation7], %s1580
        // Predicated region
        $region77: #{tpu_custom_call.1} parent=67 // pred_check
          %p1582 = pneg %p375
        $region78: #{tpu_custom_call.1} parent=67 // pred_check_branch
          %1584 = sbr.rel (%p1582) target = $region80
        $region79: #{tpu_custom_call.1} parent=67 // pred_region
          %s1586 = ssub.s32 128, 128
          %1587 = vsyncadd %s1578, %s1586
          %s1588 = smul.addr %s37, 128
          %s1589 = scalar_lea.hbm %s13, %s1588
          %s1591 = sshll.u32 %s1581, 4
          %s1592 = int_to_ptr.vmem [resolvable:$true] %s1591
          %1594 = dma.vmem_to_hbm [thread:$0]  %s1592, 128, %s1589, %s1578
        $region80: #{tpu_custom_call.1} parent=67 // pred_fallthru
          _
      $region68: #{tpu_custom_call.1} parent=5 // pred_fallthru
        _
      %p1595 = scmp.le.s32.totalorder 2, %s28
      // Predicated region
      $region81: #{tpu_custom_call.1} parent=5 // pred_check
        %p1596 = pneg %p1595
      $region82: #{tpu_custom_call.1} parent=5 // pred_check_branch
        %1598 = sbr.rel (%p1596) target = $region84
      $region83: #{tpu_custom_call.1} parent=5 // pred_region
        %s1599 = ssub.s32 %s28, 2
        // Predicated region
        $region85: #{tpu_custom_call.1} parent=83 // pred_check
          %p1600 = pneg %p381
        $region86: #{tpu_custom_call.1} parent=83 // pred_check_branch
          %1602 = sbr.rel (%p1600) target = $region88
        $region87: #{tpu_custom_call.1} parent=83 // pred_region
          %s1603 = sand.u32 %s366, 1
          %s1604 = scalar_lea.sflag [#allocation8], %s1603
          %s1605 = sand.u32 %s366, 1
          %s1606 = smul.addr %s1605, 8
          %s1607 = scalar_lea.vmem [#allocation7], %s1606
          %1608 = dma.done %s1604, 128
        $region88: #{tpu_custom_call.1} parent=83 // pred_fallthru
          _
      $region84: #{tpu_custom_call.1} parent=5 // pred_fallthru
        _
    $region6: #{tpu_custom_call.1} parent=1 // loop_footer
      %s32 = sadd.s32 1, %s28
    $region7: #{tpu_custom_call.1} parent=1 // loop_footer_branch
      %27 = sbr.rel target = $region3
    $region8: #{tpu_custom_call.1} parent=1 // loop_exit
      _
    %1609 = vsyncpa [#allocation8], 1
    %s1610 = scalar_lea.sflag [#allocation8], 1
    %1611 = vsyncpa %s1610, 1

</llo_original>
